<compile_context>
chip_gen: v6e
topology: v6e:2x2x1
jax: 0.10.0
libtpu: 0.0.40
codegen_flags: <defaults>
</compile_context>

<pallas_src>
import math
from functools import partial

import jax
import jax.numpy as jnp
from jax.experimental import pallas as pl
from jax.experimental.pallas import tpu as pltpu


def _xavier_uniform(key, out_f, in_f, dtype=jnp.float32):
    # matches torch.nn.init.xavier_uniform_ (gain=1)
    limit = math.sqrt(6.0 / (in_f + out_f))
    return jax.random.uniform(key, (out_f, in_f), dtype=dtype, minval=-limit, maxval=limit)


def _attention_kernel(q_ref, k_ref, v_ref,
                      wq_ref, bq_ref, wk_ref, bk_ref,
                      wv_ref, bv_ref, wo_ref, bo_ref,
                      out_ref, *, h, d_k, d_v):
    bt, nq, d_model = q_ref.shape
    nk = k_ref.shape[1]

    # Flatten (batch-tile, seq) -> rows so the projections are single
    # sublane-dense 2-D matmuls (leading-dim collapse only: no relayout).
    # bf16 MXU feeds, f32 accumulation. Weights arrive pre-transposed (in, out);
    # 1/sqrt(d_k) is already folded into wq/bq in the wrapper.
    q2d = q_ref[...].reshape(bt * nq, d_model).astype(jnp.bfloat16)
    k2d = k_ref[...].reshape(bt * nk, d_model).astype(jnp.bfloat16)
    v2d = v_ref[...].reshape(bt * nk, d_model).astype(jnp.bfloat16)

    q_p = jnp.dot(q2d, wq_ref[...], preferred_element_type=jnp.float32) + bq_ref[...]
    k_p = jnp.dot(k2d, wk_ref[...], preferred_element_type=jnp.float32) + bk_ref[...]
    v_p = jnp.dot(v2d, wv_ref[...], preferred_element_type=jnp.float32) + bv_ref[...]

    q_p = q_p.reshape(bt, nq, h * d_k)
    k_p = k_p.reshape(bt, nk, h * d_k)
    v_p = v_p.reshape(bt, nk, h * d_v)

    # Head-major: unrolled static loop over lane slices; no reshape of the lane
    # dim into (h, d_k) and no cross-lane transposes moving h to a batch axis.
    # The output projection is accumulated per head so head contexts never need
    # to be concatenated back along lanes.
    out_acc = None
    for hd in range(h):
        qh = q_p[:, :, hd * d_k:(hd + 1) * d_k].astype(jnp.bfloat16)
        kh = k_p[:, :, hd * d_k:(hd + 1) * d_k].astype(jnp.bfloat16)
        vh = v_p[:, :, hd * d_v:(hd + 1) * d_v].astype(jnp.bfloat16)

        # Scaled scores (scale pre-folded into Wq/bq).
        s = jnp.einsum('bqd,bkd->bqk', qh, kh,
                       preferred_element_type=jnp.float32)

        # Numerically-stable softmax over keys, kept in f32; EUP reciprocal.
        s_max = jnp.max(s, axis=-1, keepdims=True)
        e = jnp.exp(s - s_max)
        denom = jnp.sum(e, axis=-1, keepdims=True)
        p = e * pl.reciprocal(denom, approx=True)

        # TODO(synk): dropout(p=0.1) omitted — inference / eval-mode identity.
        # TODO(synk): attention_mask / attention_weights are None in this path.

        ctx_h = jnp.einsum('bqk,bkd->bqd', p.astype(jnp.bfloat16), vh,
                           preferred_element_type=jnp.float32)

        # Per-head slice of fc_o: rows [hd*d_v, (hd+1)*d_v) of the resident
        # (h*d_v, d_model) weight — a d_v(=16)-aligned sublane slice.
        contrib = jnp.dot(ctx_h.reshape(bt * nq, d_v).astype(jnp.bfloat16),
                          wo_ref[hd * d_v:(hd + 1) * d_v, :],
                          preferred_element_type=jnp.float32)
        out_acc = contrib if out_acc is None else out_acc + contrib

    out = out_acc + bo_ref[...]
    out_ref[...] = out.reshape(bt, nq, d_model).astype(out_ref.dtype)


def scaled_dot_product_attention(queries, keys, values, params, *, h, d_k, d_v,
                                 b_tile=None):
    """queries: (b_s, nq, d_model); keys/values: (b_s, nk, d_model)."""
    b_s, nq, d_model = queries.shape
    nk = keys.shape[1]

    if b_tile is None:
        # Largest batch tile that keeps per-step rows modest while leaving at
        # least two parallel grid steps (megacore / v7x 2 TensorCores per chip).
        cands = [c for c in range(1, b_s + 1)
                 if b_s % c == 0 and c * nq <= 256 and (b_s // c >= 2 or b_s == 1)]
        b_tile = max(cands) if cands else 1
    assert b_s % b_tile == 0, (b_s, b_tile)

    wq, bq, wk, bk, wv, bv, wo, bo = params
    scale = 1.0 / math.sqrt(d_k)

    # Pre-transpose once to (in, out) and cast to bf16 (MXU-native feed);
    # biases stay f32 and are added to the f32 accumulator.
    # 1/sqrt(d_k) is folded into the Q projection here: this is a one-off,
    # parameter-sized constant rescale (not an activation pre-scale), so it
    # removes all in-kernel score scaling for free.
    wq_t = (wq.T * scale).astype(jnp.bfloat16)
    wk_t = wk.T.astype(jnp.bfloat16)
    wv_t = wv.T.astype(jnp.bfloat16)
    wo_t = wo.T.astype(jnp.bfloat16)
    bq2 = (bq.reshape(1, -1) * scale).astype(jnp.float32)
    bk2 = bk.reshape(1, -1).astype(jnp.float32)
    bv2 = bv.reshape(1, -1).astype(jnp.float32)
    bo2 = bo.reshape(1, -1).astype(jnp.float32)

    kernel = partial(_attention_kernel, h=h, d_k=d_k, d_v=d_v)

    def full(shape):
        # Constant index_map: the weight/bias block never changes across the
        # grid, so it is DMA'd once and stays resident.
        return pl.BlockSpec(shape, lambda b: (0,) * len(shape))

    return pl.pallas_call(
        kernel,
        out_shape=jax.ShapeDtypeStruct((b_s, nq, d_model), queries.dtype),
        grid_spec=pltpu.PrefetchScalarGridSpec(
            num_scalar_prefetch=0,
            grid=(b_s // b_tile,),
            in_specs=[
                pl.BlockSpec((b_tile, nq, d_model), lambda b: (b, 0, 0)),  # queries
                pl.BlockSpec((b_tile, nk, d_model), lambda b: (b, 0, 0)),  # keys
                pl.BlockSpec((b_tile, nk, d_model), lambda b: (b, 0, 0)),  # values
                full(wq_t.shape), full(bq2.shape),
                full(wk_t.shape), full(bk2.shape),
                full(wv_t.shape), full(bv2.shape),
                full(wo_t.shape), full(bo2.shape),
            ],
            out_specs=pl.BlockSpec((b_tile, nq, d_model), lambda b: (b, 0, 0)),
        ),
        compiler_params=pltpu.CompilerParams(
            dimension_semantics=("parallel",),
            vmem_limit_bytes=32 * 1024 * 1024),
    )(queries, keys, values, wq_t, bq2, wk_t, bk2, wv_t, bv2, wo_t, bo2)


def _reference(queries, keys, values, params, *, h, d_k, d_v):
    # Pure f32 JAX equivalent of the PyTorch module's forward (eval mode).
    wq, bq, wk, bk, wv, bv, wo, bo = params
    b_s, nq, d_model = queries.shape
    nk = keys.shape[1]
    q = (queries @ wq.T + bq).reshape(b_s, nq, h, d_k).transpose(0, 2, 1, 3)
    k = (keys @ wk.T + bk).reshape(b_s, nk, h, d_k).transpose(0, 2, 3, 1)
    v = (values @ wv.T + bv).reshape(b_s, nk, h, d_v).transpose(0, 2, 1, 3)
    att = jnp.matmul(q, k) / math.sqrt(d_k)
    att = jax.nn.softmax(att, axis=-1)
    out = jnp.matmul(att, v).transpose(0, 2, 1, 3).reshape(b_s, nq, h * d_v)
    return out @ wo.T + bo


if __name__ == "__main__":
    d_model, d_k, d_v, h = 32, 16, 16, 4
    b_s, nq, nk = 4, 8, 8

    key = jax.random.PRNGKey(0)
    kq, kk, kv, ko, kx1, kx2, kx3 = jax.random.split(key, 7)

    # Deterministic parameter init mirroring the module's init_weights():
    # xavier_uniform_ weights, zero biases.
    wq = _xavier_uniform(kq, h * d_k, d_model)
    wk = _xavier_uniform(kk, h * d_k, d_model)
    wv = _xavier_uniform(kv, h * d_v, d_model)
    wo = _xavier_uniform(ko, d_model, h * d_v)
    bq = jnp.zeros((h * d_k,), jnp.float32)
    bk = jnp.zeros((h * d_k,), jnp.float32)
    bv = jnp.zeros((h * d_v,), jnp.float32)
    bo = jnp.zeros((d_model,), jnp.float32)
    params = (wq, bq, wk, bk, wv, bv, wo, bo)

    queries = jax.random.normal(kx1, (b_s, nq, d_model), jnp.float32)
    keys = jax.random.normal(kx2, (b_s, nk, d_model), jnp.float32)
    values = jax.random.normal(kx3, (b_s, nk, d_model), jnp.float32)

    out = scaled_dot_product_attention(queries, keys, values, params,
                                       h=h, d_k=d_k, d_v=d_v)
    out = jax.block_until_ready(out)

    ref = _reference(queries, keys, values, params, h=h, d_k=d_k, d_v=d_v)
    assert out.shape == (b_s, nq, d_model)
    # bf16 MXU feeds + approx reciprocal -> compare against the f32 reference at
    # bf16-level tolerance.
    assert jnp.allclose(out, ref, atol=5e-2, rtol=5e-2), \
        float(jnp.max(jnp.abs(out - ref)))

    print("KERNEL_OK")
</pallas_src>

<mosaic_0001>
module attributes {stable_mosaic.version = 11 : i64} {
  func.func @_attention_kernel(%arg0: i32, %arg1: memref<2x8x32xf32, #tpu.memory_space<vmem>>, %arg2: memref<2x8x32xf32, #tpu.memory_space<vmem>>, %arg3: memref<2x8x32xf32, #tpu.memory_space<vmem>>, %arg4: memref<32x64xbf16, #tpu.memory_space<vmem>>, %arg5: memref<1x64xf32, #tpu.memory_space<vmem>>, %arg6: memref<32x64xbf16, #tpu.memory_space<vmem>>, %arg7: memref<1x64xf32, #tpu.memory_space<vmem>>, %arg8: memref<32x64xbf16, #tpu.memory_space<vmem>>, %arg9: memref<1x64xf32, #tpu.memory_space<vmem>>, %arg10: memref<64x32xbf16, #tpu.memory_space<vmem>>, %arg11: memref<1x32xf32, #tpu.memory_space<vmem>>, %arg12: memref<2x8x32xf32, #tpu.memory_space<vmem>>) attributes {dimension_semantics = [#tpu.dimension_semantics<parallel>], iteration_bounds = array<i64: 2>, scalar_prefetch = 0 : i64, scratch_operands = 0 : i64, tpu.core_type = #tpu.core_type<tc>, window_params = [{transform_indices = @transform_0, window_bounds = array<i64: 2, 8, 32>}, {transform_indices = @transform_1, window_bounds = array<i64: 2, 8, 32>}, {transform_indices = @transform_2, window_bounds = array<i64: 2, 8, 32>}, {pipeline_mode = #tpu.pipeline_mode<synchronous>, transform_indices = @transform_3, window_bounds = array<i64: 32, 64>}, {pipeline_mode = #tpu.pipeline_mode<synchronous>, transform_indices = @transform_4, window_bounds = array<i64: 1, 64>}, {pipeline_mode = #tpu.pipeline_mode<synchronous>, transform_indices = @transform_5, window_bounds = array<i64: 32, 64>}, {pipeline_mode = #tpu.pipeline_mode<synchronous>, transform_indices = @transform_6, window_bounds = array<i64: 1, 64>}, {pipeline_mode = #tpu.pipeline_mode<synchronous>, transform_indices = @transform_7, window_bounds = array<i64: 32, 64>}, {pipeline_mode = #tpu.pipeline_mode<synchronous>, transform_indices = @transform_8, window_bounds = array<i64: 1, 64>}, {pipeline_mode = #tpu.pipeline_mode<synchronous>, transform_indices = @transform_9, window_bounds = array<i64: 64, 32>}, {pipeline_mode = #tpu.pipeline_mode<synchronous>, transform_indices = @transform_10, window_bounds = array<i64: 1, 32>}, {transform_indices = @transform_11, window_bounds = array<i64: 2, 8, 32>}]} {
    %c0 = arith.constant 0 : index
    %c0_0 = arith.constant 0 : index
    %c0_1 = arith.constant 0 : index
    %0 = vector.load %arg1[%c0, %c0_0, %c0_1] : memref<2x8x32xf32, #tpu.memory_space<vmem>>, vector<2x8x32xf32>
    %1 = vector.shape_cast %0 : vector<2x8x32xf32> to vector<16x32xf32>
    %2 = arith.truncf %1 : vector<16x32xf32> to vector<16x32xbf16>
    %c0_2 = arith.constant 0 : index
    %c0_3 = arith.constant 0 : index
    %c0_4 = arith.constant 0 : index
    %3 = vector.load %arg2[%c0_2, %c0_3, %c0_4] : memref<2x8x32xf32, #tpu.memory_space<vmem>>, vector<2x8x32xf32>
    %4 = vector.shape_cast %3 : vector<2x8x32xf32> to vector<16x32xf32>
    %5 = arith.truncf %4 : vector<16x32xf32> to vector<16x32xbf16>
    %c0_5 = arith.constant 0 : index
    %c0_6 = arith.constant 0 : index
    %c0_7 = arith.constant 0 : index
    %6 = vector.load %arg3[%c0_5, %c0_6, %c0_7] : memref<2x8x32xf32, #tpu.memory_space<vmem>>, vector<2x8x32xf32>
    %7 = vector.shape_cast %6 : vector<2x8x32xf32> to vector<16x32xf32>
    %8 = arith.truncf %7 : vector<16x32xf32> to vector<16x32xbf16>
    %c0_8 = arith.constant 0 : index
    %c0_9 = arith.constant 0 : index
    %9 = vector.load %arg4[%c0_8, %c0_9] : memref<32x64xbf16, #tpu.memory_space<vmem>>, vector<32x64xbf16>
    %cst = arith.constant dense<0.000000e+00> : vector<16x64xf32>
    %10 = tpu.matmul %2, %9, %cst {dimension_numbers = #tpu.dot_dimension_numbers<[1], [0], [0], [1], [0, 0, 1, 1], [], []>} : vector<16x32xbf16>, vector<32x64xbf16>, vector<16x64xf32> -> vector<16x64xf32>
    %c0_10 = arith.constant 0 : index
    %c0_11 = arith.constant 0 : index
    %11 = vector.load %arg5[%c0_10, %c0_11] : memref<1x64xf32, #tpu.memory_space<vmem>>, vector<1x64xf32>
    %12 = vector.broadcast %11 : vector<1x64xf32> to vector<16x64xf32>
    %13 = arith.addf %10, %12 : vector<16x64xf32>
    %c0_12 = arith.constant 0 : index
    %c0_13 = arith.constant 0 : index
    %14 = vector.load %arg6[%c0_12, %c0_13] : memref<32x64xbf16, #tpu.memory_space<vmem>>, vector<32x64xbf16>
    %cst_14 = arith.constant dense<0.000000e+00> : vector<16x64xf32>
    %15 = tpu.matmul %5, %14, %cst_14 {dimension_numbers = #tpu.dot_dimension_numbers<[1], [0], [0], [1], [0, 0, 1, 1], [], []>} : vector<16x32xbf16>, vector<32x64xbf16>, vector<16x64xf32> -> vector<16x64xf32>
    %c0_15 = arith.constant 0 : index
    %c0_16 = arith.constant 0 : index
    %16 = vector.load %arg7[%c0_15, %c0_16] : memref<1x64xf32, #tpu.memory_space<vmem>>, vector<1x64xf32>
    %17 = vector.broadcast %16 : vector<1x64xf32> to vector<16x64xf32>
    %18 = arith.addf %15, %17 : vector<16x64xf32>
    %c0_17 = arith.constant 0 : index
    %c0_18 = arith.constant 0 : index
    %19 = vector.load %arg8[%c0_17, %c0_18] : memref<32x64xbf16, #tpu.memory_space<vmem>>, vector<32x64xbf16>
    %cst_19 = arith.constant dense<0.000000e+00> : vector<16x64xf32>
    %20 = tpu.matmul %8, %19, %cst_19 {dimension_numbers = #tpu.dot_dimension_numbers<[1], [0], [0], [1], [0, 0, 1, 1], [], []>} : vector<16x32xbf16>, vector<32x64xbf16>, vector<16x64xf32> -> vector<16x64xf32>
    %c0_20 = arith.constant 0 : index
    %c0_21 = arith.constant 0 : index
    %21 = vector.load %arg9[%c0_20, %c0_21] : memref<1x64xf32, #tpu.memory_space<vmem>>, vector<1x64xf32>
    %22 = vector.broadcast %21 : vector<1x64xf32> to vector<16x64xf32>
    %23 = arith.addf %20, %22 : vector<16x64xf32>
    %24 = vector.shape_cast %13 : vector<16x64xf32> to vector<2x8x64xf32>
    %25 = vector.shape_cast %18 : vector<16x64xf32> to vector<2x8x64xf32>
    %26 = vector.shape_cast %23 : vector<16x64xf32> to vector<2x8x64xf32>
    %27 = vector.extract_strided_slice %24 {offsets = [0, 0, 0], sizes = [2, 8, 16], strides = [1, 1, 1]} : vector<2x8x64xf32> to vector<2x8x16xf32>
    %28 = arith.truncf %27 : vector<2x8x16xf32> to vector<2x8x16xbf16>
    %29 = vector.extract_strided_slice %25 {offsets = [0, 0, 0], sizes = [2, 8, 16], strides = [1, 1, 1]} : vector<2x8x64xf32> to vector<2x8x16xf32>
    %30 = arith.truncf %29 : vector<2x8x16xf32> to vector<2x8x16xbf16>
    %31 = vector.extract_strided_slice %26 {offsets = [0, 0, 0], sizes = [2, 8, 16], strides = [1, 1, 1]} : vector<2x8x64xf32> to vector<2x8x16xf32>
    %32 = arith.truncf %31 : vector<2x8x16xf32> to vector<2x8x16xbf16>
    "tpu.trace_start"() <{level = 10 : i32, message = "bqd,bkd->bqk"}> : () -> ()
    %cst_22 = arith.constant dense<0.000000e+00> : vector<2x8x8xf32>
    %33 = tpu.matmul %28, %30, %cst_22 {dimension_numbers = #tpu.dot_dimension_numbers<[2], [2], [1], [1], [0, 0, 0, 1, 1, 1], [0], [0]>} : vector<2x8x16xbf16>, vector<2x8x16xbf16>, vector<2x8x8xf32> -> vector<2x8x8xf32>
    "tpu.trace_stop"() : () -> ()
    %cst_23 = arith.constant dense<0xFF800000> : vector<2x8xf32>
    %34 = vector.multi_reduction <maximumf>, %33, %cst_23 [2] : vector<2x8x8xf32> to vector<2x8xf32>
    %35 = vector.shape_cast %34 : vector<2x8xf32> to vector<2x8x1xf32>
    %36 = vector.broadcast %35 : vector<2x8x1xf32> to vector<2x8x8xf32>
    %37 = arith.subf %33, %36 : vector<2x8x8xf32>
    %38 = math.exp %37 : vector<2x8x8xf32>
    %cst_24 = arith.constant dense<0.000000e+00> : vector<2x8xf32>
    %39 = vector.multi_reduction <add>, %38, %cst_24 [2] : vector<2x8x8xf32> to vector<2x8xf32>
    %40 = vector.shape_cast %39 : vector<2x8xf32> to vector<2x8x1xf32>
    %41 = tpu.reciprocal %40 {approx = true} : vector<2x8x1xf32> -> vector<2x8x1xf32>
    %42 = vector.broadcast %41 : vector<2x8x1xf32> to vector<2x8x8xf32>
    %43 = arith.mulf %38, %42 : vector<2x8x8xf32>
    %44 = arith.truncf %43 : vector<2x8x8xf32> to vector<2x8x8xbf16>
    "tpu.trace_start"() <{level = 10 : i32, message = "bqk,bkd->bqd"}> : () -> ()
    %cst_25 = arith.constant dense<0.000000e+00> : vector<2x8x16xf32>
    %45 = tpu.matmul %44, %32, %cst_25 {dimension_numbers = #tpu.dot_dimension_numbers<[2], [1], [1], [2], [0, 0, 0, 1, 1, 2], [0], [0]>} : vector<2x8x8xbf16>, vector<2x8x16xbf16>, vector<2x8x16xf32> -> vector<2x8x16xf32>
    "tpu.trace_stop"() : () -> ()
    %46 = vector.shape_cast %45 : vector<2x8x16xf32> to vector<16x16xf32>
    %47 = arith.truncf %46 : vector<16x16xf32> to vector<16x16xbf16>
    %c0_26 = arith.constant 0 : index
    %c0_27 = arith.constant 0 : index
    %48 = vector.load %arg10[%c0_26, %c0_27] : memref<64x32xbf16, #tpu.memory_space<vmem>>, vector<16x32xbf16>
    %cst_28 = arith.constant dense<0.000000e+00> : vector<16x32xf32>
    %49 = tpu.matmul %47, %48, %cst_28 {dimension_numbers = #tpu.dot_dimension_numbers<[1], [0], [0], [1], [0, 0, 1, 1], [], []>} : vector<16x16xbf16>, vector<16x32xbf16>, vector<16x32xf32> -> vector<16x32xf32>
    %50 = vector.extract_strided_slice %24 {offsets = [0, 0, 16], sizes = [2, 8, 16], strides = [1, 1, 1]} : vector<2x8x64xf32> to vector<2x8x16xf32>
    %51 = arith.truncf %50 : vector<2x8x16xf32> to vector<2x8x16xbf16>
    %52 = vector.extract_strided_slice %25 {offsets = [0, 0, 16], sizes = [2, 8, 16], strides = [1, 1, 1]} : vector<2x8x64xf32> to vector<2x8x16xf32>
    %53 = arith.truncf %52 : vector<2x8x16xf32> to vector<2x8x16xbf16>
    %54 = vector.extract_strided_slice %26 {offsets = [0, 0, 16], sizes = [2, 8, 16], strides = [1, 1, 1]} : vector<2x8x64xf32> to vector<2x8x16xf32>
    %55 = arith.truncf %54 : vector<2x8x16xf32> to vector<2x8x16xbf16>
    "tpu.trace_start"() <{level = 10 : i32, message = "bqd,bkd->bqk"}> : () -> ()
    %cst_29 = arith.constant dense<0.000000e+00> : vector<2x8x8xf32>
    %56 = tpu.matmul %51, %53, %cst_29 {dimension_numbers = #tpu.dot_dimension_numbers<[2], [2], [1], [1], [0, 0, 0, 1, 1, 1], [0], [0]>} : vector<2x8x16xbf16>, vector<2x8x16xbf16>, vector<2x8x8xf32> -> vector<2x8x8xf32>
    "tpu.trace_stop"() : () -> ()
    %cst_30 = arith.constant dense<0xFF800000> : vector<2x8xf32>
    %57 = vector.multi_reduction <maximumf>, %56, %cst_30 [2] : vector<2x8x8xf32> to vector<2x8xf32>
    %58 = vector.shape_cast %57 : vector<2x8xf32> to vector<2x8x1xf32>
    %59 = vector.broadcast %58 : vector<2x8x1xf32> to vector<2x8x8xf32>
    %60 = arith.subf %56, %59 : vector<2x8x8xf32>
    %61 = math.exp %60 : vector<2x8x8xf32>
    %cst_31 = arith.constant dense<0.000000e+00> : vector<2x8xf32>
    %62 = vector.multi_reduction <add>, %61, %cst_31 [2] : vector<2x8x8xf32> to vector<2x8xf32>
    %63 = vector.shape_cast %62 : vector<2x8xf32> to vector<2x8x1xf32>
    %64 = tpu.reciprocal %63 {approx = true} : vector<2x8x1xf32> -> vector<2x8x1xf32>
    %65 = vector.broadcast %64 : vector<2x8x1xf32> to vector<2x8x8xf32>
    %66 = arith.mulf %61, %65 : vector<2x8x8xf32>
    %67 = arith.truncf %66 : vector<2x8x8xf32> to vector<2x8x8xbf16>
    "tpu.trace_start"() <{level = 10 : i32, message = "bqk,bkd->bqd"}> : () -> ()
    %cst_32 = arith.constant dense<0.000000e+00> : vector<2x8x16xf32>
    %68 = tpu.matmul %67, %55, %cst_32 {dimension_numbers = #tpu.dot_dimension_numbers<[2], [1], [1], [2], [0, 0, 0, 1, 1, 2], [0], [0]>} : vector<2x8x8xbf16>, vector<2x8x16xbf16>, vector<2x8x16xf32> -> vector<2x8x16xf32>
    "tpu.trace_stop"() : () -> ()
    %69 = vector.shape_cast %68 : vector<2x8x16xf32> to vector<16x16xf32>
    %70 = arith.truncf %69 : vector<16x16xf32> to vector<16x16xbf16>
    %c16 = arith.constant 16 : index
    %c0_33 = arith.constant 0 : index
    %71 = vector.load %arg10[%c16, %c0_33] : memref<64x32xbf16, #tpu.memory_space<vmem>>, vector<16x32xbf16>
    %cst_34 = arith.constant dense<0.000000e+00> : vector<16x32xf32>
    %72 = tpu.matmul %70, %71, %cst_34 {dimension_numbers = #tpu.dot_dimension_numbers<[1], [0], [0], [1], [0, 0, 1, 1], [], []>} : vector<16x16xbf16>, vector<16x32xbf16>, vector<16x32xf32> -> vector<16x32xf32>
    %73 = arith.addf %49, %72 : vector<16x32xf32>
    %74 = vector.extract_strided_slice %24 {offsets = [0, 0, 32], sizes = [2, 8, 16], strides = [1, 1, 1]} : vector<2x8x64xf32> to vector<2x8x16xf32>
    %75 = arith.truncf %74 : vector<2x8x16xf32> to vector<2x8x16xbf16>
    %76 = vector.extract_strided_slice %25 {offsets = [0, 0, 32], sizes = [2, 8, 16], strides = [1, 1, 1]} : vector<2x8x64xf32> to vector<2x8x16xf32>
    %77 = arith.truncf %76 : vector<2x8x16xf32> to vector<2x8x16xbf16>
    %78 = vector.extract_strided_slice %26 {offsets = [0, 0, 32], sizes = [2, 8, 16], strides = [1, 1, 1]} : vector<2x8x64xf32> to vector<2x8x16xf32>
    %79 = arith.truncf %78 : vector<2x8x16xf32> to vector<2x8x16xbf16>
    "tpu.trace_start"() <{level = 10 : i32, message = "bqd,bkd->bqk"}> : () -> ()
    %cst_35 = arith.constant dense<0.000000e+00> : vector<2x8x8xf32>
    %80 = tpu.matmul %75, %77, %cst_35 {dimension_numbers = #tpu.dot_dimension_numbers<[2], [2], [1], [1], [0, 0, 0, 1, 1, 1], [0], [0]>} : vector<2x8x16xbf16>, vector<2x8x16xbf16>, vector<2x8x8xf32> -> vector<2x8x8xf32>
    "tpu.trace_stop"() : () -> ()
    %cst_36 = arith.constant dense<0xFF800000> : vector<2x8xf32>
    %81 = vector.multi_reduction <maximumf>, %80, %cst_36 [2] : vector<2x8x8xf32> to vector<2x8xf32>
    %82 = vector.shape_cast %81 : vector<2x8xf32> to vector<2x8x1xf32>
    %83 = vector.broadcast %82 : vector<2x8x1xf32> to vector<2x8x8xf32>
    %84 = arith.subf %80, %83 : vector<2x8x8xf32>
    %85 = math.exp %84 : vector<2x8x8xf32>
    %cst_37 = arith.constant dense<0.000000e+00> : vector<2x8xf32>
    %86 = vector.multi_reduction <add>, %85, %cst_37 [2] : vector<2x8x8xf32> to vector<2x8xf32>
    %87 = vector.shape_cast %86 : vector<2x8xf32> to vector<2x8x1xf32>
    %88 = tpu.reciprocal %87 {approx = true} : vector<2x8x1xf32> -> vector<2x8x1xf32>
    %89 = vector.broadcast %88 : vector<2x8x1xf32> to vector<2x8x8xf32>
    %90 = arith.mulf %85, %89 : vector<2x8x8xf32>
    %91 = arith.truncf %90 : vector<2x8x8xf32> to vector<2x8x8xbf16>
    "tpu.trace_start"() <{level = 10 : i32, message = "bqk,bkd->bqd"}> : () -> ()
    %cst_38 = arith.constant dense<0.000000e+00> : vector<2x8x16xf32>
    %92 = tpu.matmul %91, %79, %cst_38 {dimension_numbers = #tpu.dot_dimension_numbers<[2], [1], [1], [2], [0, 0, 0, 1, 1, 2], [0], [0]>} : vector<2x8x8xbf16>, vector<2x8x16xbf16>, vector<2x8x16xf32> -> vector<2x8x16xf32>
    "tpu.trace_stop"() : () -> ()
    %93 = vector.shape_cast %92 : vector<2x8x16xf32> to vector<16x16xf32>
    %94 = arith.truncf %93 : vector<16x16xf32> to vector<16x16xbf16>
    %c32 = arith.constant 32 : index
    %c0_39 = arith.constant 0 : index
    %95 = vector.load %arg10[%c32, %c0_39] : memref<64x32xbf16, #tpu.memory_space<vmem>>, vector<16x32xbf16>
    %cst_40 = arith.constant dense<0.000000e+00> : vector<16x32xf32>
    %96 = tpu.matmul %94, %95, %cst_40 {dimension_numbers = #tpu.dot_dimension_numbers<[1], [0], [0], [1], [0, 0, 1, 1], [], []>} : vector<16x16xbf16>, vector<16x32xbf16>, vector<16x32xf32> -> vector<16x32xf32>
    %97 = arith.addf %73, %96 : vector<16x32xf32>
    %98 = vector.extract_strided_slice %24 {offsets = [0, 0, 48], sizes = [2, 8, 16], strides = [1, 1, 1]} : vector<2x8x64xf32> to vector<2x8x16xf32>
    %99 = arith.truncf %98 : vector<2x8x16xf32> to vector<2x8x16xbf16>
    %100 = vector.extract_strided_slice %25 {offsets = [0, 0, 48], sizes = [2, 8, 16], strides = [1, 1, 1]} : vector<2x8x64xf32> to vector<2x8x16xf32>
    %101 = arith.truncf %100 : vector<2x8x16xf32> to vector<2x8x16xbf16>
    %102 = vector.extract_strided_slice %26 {offsets = [0, 0, 48], sizes = [2, 8, 16], strides = [1, 1, 1]} : vector<2x8x64xf32> to vector<2x8x16xf32>
    %103 = arith.truncf %102 : vector<2x8x16xf32> to vector<2x8x16xbf16>
    "tpu.trace_start"() <{level = 10 : i32, message = "bqd,bkd->bqk"}> : () -> ()
    %cst_41 = arith.constant dense<0.000000e+00> : vector<2x8x8xf32>
    %104 = tpu.matmul %99, %101, %cst_41 {dimension_numbers = #tpu.dot_dimension_numbers<[2], [2], [1], [1], [0, 0, 0, 1, 1, 1], [0], [0]>} : vector<2x8x16xbf16>, vector<2x8x16xbf16>, vector<2x8x8xf32> -> vector<2x8x8xf32>
    "tpu.trace_stop"() : () -> ()
    %cst_42 = arith.constant dense<0xFF800000> : vector<2x8xf32>
    %105 = vector.multi_reduction <maximumf>, %104, %cst_42 [2] : vector<2x8x8xf32> to vector<2x8xf32>
    %106 = vector.shape_cast %105 : vector<2x8xf32> to vector<2x8x1xf32>
    %107 = vector.broadcast %106 : vector<2x8x1xf32> to vector<2x8x8xf32>
    %108 = arith.subf %104, %107 : vector<2x8x8xf32>
    %109 = math.exp %108 : vector<2x8x8xf32>
    %cst_43 = arith.constant dense<0.000000e+00> : vector<2x8xf32>
    %110 = vector.multi_reduction <add>, %109, %cst_43 [2] : vector<2x8x8xf32> to vector<2x8xf32>
    %111 = vector.shape_cast %110 : vector<2x8xf32> to vector<2x8x1xf32>
    %112 = tpu.reciprocal %111 {approx = true} : vector<2x8x1xf32> -> vector<2x8x1xf32>
    %113 = vector.broadcast %112 : vector<2x8x1xf32> to vector<2x8x8xf32>
    %114 = arith.mulf %109, %113 : vector<2x8x8xf32>
    %115 = arith.truncf %114 : vector<2x8x8xf32> to vector<2x8x8xbf16>
    "tpu.trace_start"() <{level = 10 : i32, message = "bqk,bkd->bqd"}> : () -> ()
    %cst_44 = arith.constant dense<0.000000e+00> : vector<2x8x16xf32>
    %116 = tpu.matmul %115, %103, %cst_44 {dimension_numbers = #tpu.dot_dimension_numbers<[2], [1], [1], [2], [0, 0, 0, 1, 1, 2], [0], [0]>} : vector<2x8x8xbf16>, vector<2x8x16xbf16>, vector<2x8x16xf32> -> vector<2x8x16xf32>
    "tpu.trace_stop"() : () -> ()
    %117 = vector.shape_cast %116 : vector<2x8x16xf32> to vector<16x16xf32>
    %118 = arith.truncf %117 : vector<16x16xf32> to vector<16x16xbf16>
    %c48 = arith.constant 48 : index
    %c0_45 = arith.constant 0 : index
    %119 = vector.load %arg10[%c48, %c0_45] : memref<64x32xbf16, #tpu.memory_space<vmem>>, vector<16x32xbf16>
    %cst_46 = arith.constant dense<0.000000e+00> : vector<16x32xf32>
    %120 = tpu.matmul %118, %119, %cst_46 {dimension_numbers = #tpu.dot_dimension_numbers<[1], [0], [0], [1], [0, 0, 1, 1], [], []>} : vector<16x16xbf16>, vector<16x32xbf16>, vector<16x32xf32> -> vector<16x32xf32>
    %121 = arith.addf %97, %120 : vector<16x32xf32>
    %c0_47 = arith.constant 0 : index
    %c0_48 = arith.constant 0 : index
    %122 = vector.load %arg11[%c0_47, %c0_48] : memref<1x32xf32, #tpu.memory_space<vmem>>, vector<1x32xf32>
    %123 = vector.broadcast %122 : vector<1x32xf32> to vector<16x32xf32>
    %124 = arith.addf %121, %123 : vector<16x32xf32>
    %125 = vector.shape_cast %124 : vector<16x32xf32> to vector<2x8x32xf32>
    %c0_49 = arith.constant 0 : index
    %c0_50 = arith.constant 0 : index
    %c0_51 = arith.constant 0 : index
    %126 = vector.load %arg12[%c0_49, %c0_50, %c0_51] : memref<2x8x32xf32, #tpu.memory_space<vmem>>, vector<2x8x32xf32>
    tpu.vector_store %arg12[%c0_49, %c0_50, %c0_51], %125 {strides = array<i32>} : memref<2x8x32xf32, #tpu.memory_space<vmem>>, vector<2x8x32xf32>,
    return
  }
  func.func @transform_0(%arg0: i32) -> (i32, i32, i32) {
    %c0_i32 = arith.constant 0 : i32
    %c0_i32_0 = arith.constant 0 : i32
    %c0_i32_1 = arith.constant 0 : i32
    return %arg0, %c0_i32, %c0_i32_0 : i32, i32, i32
  }
  func.func @transform_1(%arg0: i32) -> (i32, i32, i32) {
    %c0_i32 = arith.constant 0 : i32
    %c0_i32_0 = arith.constant 0 : i32
    %c0_i32_1 = arith.constant 0 : i32
    return %arg0, %c0_i32, %c0_i32_0 : i32, i32, i32
  }
  func.func @transform_2(%arg0: i32) -> (i32, i32, i32) {
    %c0_i32 = arith.constant 0 : i32
    %c0_i32_0 = arith.constant 0 : i32
    %c0_i32_1 = arith.constant 0 : i32
    return %arg0, %c0_i32, %c0_i32_0 : i32, i32, i32
  }
  func.func @transform_3(%arg0: i32) -> (i32, i32) {
    %c0_i32 = arith.constant 0 : i32
    %c0_i32_0 = arith.constant 0 : i32
    %c0_i32_1 = arith.constant 0 : i32
    return %c0_i32, %c0_i32_0 : i32, i32
  }
  func.func @transform_4(%arg0: i32) -> (i32, i32) {
    %c0_i32 = arith.constant 0 : i32
    %c0_i32_0 = arith.constant 0 : i32
    %c0_i32_1 = arith.constant 0 : i32
    return %c0_i32, %c0_i32_0 : i32, i32
  }
  func.func @transform_5(%arg0: i32) -> (i32, i32) {
    %c0_i32 = arith.constant 0 : i32
    %c0_i32_0 = arith.constant 0 : i32
    %c0_i32_1 = arith.constant 0 : i32
    return %c0_i32, %c0_i32_0 : i32, i32
  }
  func.func @transform_6(%arg0: i32) -> (i32, i32) {
    %c0_i32 = arith.constant 0 : i32
    %c0_i32_0 = arith.constant 0 : i32
    %c0_i32_1 = arith.constant 0 : i32
    return %c0_i32, %c0_i32_0 : i32, i32
  }
  func.func @transform_7(%arg0: i32) -> (i32, i32) {
    %c0_i32 = arith.constant 0 : i32
    %c0_i32_0 = arith.constant 0 : i32
    %c0_i32_1 = arith.constant 0 : i32
    return %c0_i32, %c0_i32_0 : i32, i32
  }
  func.func @transform_8(%arg0: i32) -> (i32, i32) {
    %c0_i32 = arith.constant 0 : i32
    %c0_i32_0 = arith.constant 0 : i32
    %c0_i32_1 = arith.constant 0 : i32
    return %c0_i32, %c0_i32_0 : i32, i32
  }
  func.func @transform_9(%arg0: i32) -> (i32, i32) {
    %c0_i32 = arith.constant 0 : i32
    %c0_i32_0 = arith.constant 0 : i32
    %c0_i32_1 = arith.constant 0 : i32
    return %c0_i32, %c0_i32_0 : i32, i32
  }
  func.func @transform_10(%arg0: i32) -> (i32, i32) {
    %c0_i32 = arith.constant 0 : i32
    %c0_i32_0 = arith.constant 0 : i32
    %c0_i32_1 = arith.constant 0 : i32
    return %c0_i32, %c0_i32_0 : i32, i32
  }
  func.func @transform_11(%arg0: i32) -> (i32, i32, i32) {
    %c0_i32 = arith.constant 0 : i32
    %c0_i32_0 = arith.constant 0 : i32
    %c0_i32_1 = arith.constant 0 : i32
    return %arg0, %c0_i32, %c0_i32_0 : i32, i32, i32
  }
}

</mosaic_0001>

<llo_original>
// kernel: tpu_custom_call.1
$region0: #{tpu_custom_call.1}
  #allocation0 [shape = 'u32[]', space=smem, size = 0x4, offset = 0x4, fixed_abs, tag = 'smem constant byte address 0x4 - core index']
  #allocation1 [shape = 'u32[144,128]{1,0:T(1,128)}', space=vmem, size = 0x12000, scoped, tag = 'internal scratch']
  %s0 = inlined_call_operand.vmem [shape: f32[4,8,32], index: 0, kind: input, shape index: {}]
  %s1 = inlined_call_operand.hbm [shape: f32[4,8,32], index: 1, kind: input, shape index: {}]
  %s2 = inlined_call_operand.hbm [shape: f32[4,8,32], index: 2, kind: input, shape index: {}]
  %s3 = inlined_call_operand.vmem [shape: bf16[32,64], index: 3, kind: input, shape index: {}]
  %s4 = inlined_call_operand.hbm [shape: f32[1,64], index: 4, kind: input, shape index: {}]
  %s5 = inlined_call_operand.hbm [shape: bf16[32,64], index: 5, kind: input, shape index: {}]
  %s6 = inlined_call_operand.hbm [shape: f32[1,64], index: 6, kind: input, shape index: {}]
  %s7 = inlined_call_operand.hbm [shape: bf16[32,64], index: 7, kind: input, shape index: {}]
  %s8 = inlined_call_operand.hbm [shape: f32[1,64], index: 8, kind: input, shape index: {}]
  %s9 = inlined_call_operand.vmem [shape: bf16[64,32], index: 9, kind: input, shape index: {}]
  %s10 = inlined_call_operand.vmem [shape: f32[1,32], index: 10, kind: input, shape index: {}]
  %s11 = inlined_call_operand.hbm [shape: f32[4,8,32], index: 11, kind: output, shape index: {}]
  %s12 = sld [smem:[#allocation0]]
  $region105: #{tpu_custom_call.1} parent=0
    _
  %s14 = ssub.s32 1, %s12
  %s15 = scalar_select 0, %s14, %s12
  $region1: #{tpu_custom_call.1} parent=0
    #allocation2 [shape = 'u8[16384]{0}', space=vmem, size = 0x4000, scoped, tag = 'input window, operand 1']
    #allocation3 [shape = 's32[2]{0}', space=sflag, size = 0x8, scoped, tag = 'scoped memory for tpu_custom_call.1']
    #allocation4 [shape = 's32[2]{0}', space=sflag, size = 0x8, scoped, tag = 'scoped memory for tpu_custom_call.1']
    #allocation5 [shape = 'u8[16384]{0}', space=vmem, size = 0x4000, scoped, tag = 'input window, operand 2']
    #allocation6 [shape = 's32[2]{0}', space=sflag, size = 0x8, scoped, tag = 'scoped memory for tpu_custom_call.1']
    #allocation7 [shape = 'u8[512]{0}', space=vmem, size = 0x400, scoped, tag = 'input window, operand 4, single buffered']
    #allocation8 [shape = 'u8[8192]{0}', space=vmem, size = 0x2000, scoped, tag = 'input window, operand 5, single buffered']
    #allocation9 [shape = 's32[1]{0}', space=sflag, size = 0x4, scoped, tag = 'scoped memory for tpu_custom_call.1']
    #allocation10 [shape = 'u8[512]{0}', space=vmem, size = 0x400, scoped, tag = 'input window, operand 6, single buffered']
    #allocation11 [shape = 'u8[8192]{0}', space=vmem, size = 0x2000, scoped, tag = 'input window, operand 7, single buffered']
    #allocation12 [shape = 's32[1]{0}', space=sflag, size = 0x4, scoped, tag = 'scoped memory for tpu_custom_call.1']
    #allocation13 [shape = 'u8[512]{0}', space=vmem, size = 0x400, scoped, tag = 'input window, operand 8, single buffered']
    #allocation14 [shape = 'u8[16384]{0}', space=vmem, size = 0x4000, scoped, tag = 'output window, operand 0']
    %16 = vsyncpa [#allocation3], 0
    %s17 = scalar_lea.sflag [#allocation3], 1
    %18 = vsyncpa %s17, 0
    %19 = vsyncpa [#allocation6], 0
    %s20 = scalar_lea.sflag [#allocation6], 1
    %21 = vsyncpa %s20, 0
    %22 = vsyncpa [#allocation9], 0
    %23 = vsyncpa [#allocation12], 0
    %24 = vsyncpa [#allocation4], 0
    %s25 = scalar_lea.sflag [#allocation4], 1
    %26 = vsyncpa %s25, 0
    loop: start=0, step=1, limit=4
    $region2: #{tpu_custom_call.1} parent=1 // loop_pre_header
      _
    $region3: #{tpu_custom_call.1} parent=1 // loop_header
      %s28 = sphi 0, %s32
      %p29 = scmp.ge.s32.totalorder %s28, 4
      %s38 = sphi 0, %s40
      %s41 = sphi 0, %s38
      %s42 = sphi 0, %s41
      %s58 = sphi 0, %s42
      %s64 = sphi 0, %s66
      %s67 = sphi 0, %s64
      %s68 = sphi 0, %s67
      %s84 = sphi 0, %s68
      %s90 = sphi 0, %s92
      %s93 = sphi 0, %s90
      %s94 = sphi 0, %s93
      %s110 = sphi 0, %s94
      %s114 = sphi 0, %s114
      %s116 = sphi 0, %s114
      %s117 = sphi 0, %s116
      %s131 = sphi 0, %s117
      %s135 = sphi 0, %s135
      %s137 = sphi 0, %s135
      %s138 = sphi 0, %s137
      %s152 = sphi 0, %s138
      %s156 = sphi 0, %s156
      %s158 = sphi 0, %s156
      %s159 = sphi 0, %s158
      %s173 = sphi 0, %s159
      %s177 = sphi 0, %s177
      %s179 = sphi 0, %s177
      %s180 = sphi 0, %s179
      %s194 = sphi 0, %s180
      %s198 = sphi 0, %s198
      %s200 = sphi 0, %s198
      %s201 = sphi 0, %s200
      %s215 = sphi 0, %s201
      %s219 = sphi 0, %s219
      %s221 = sphi 0, %s219
      %s222 = sphi 0, %s221
      %s236 = sphi 0, %s222
      %s240 = sphi 0, %s240
      %s242 = sphi 0, %s240
      %s243 = sphi 0, %s242
      %s257 = sphi 0, %s243
      %s261 = sphi 0, %s261
      %s263 = sphi 0, %s261
      %s264 = sphi 0, %s263
      %s278 = sphi 0, %s264
      %s284 = sphi 0, %s286
      %s287 = sphi 0, %s284
      %s288 = sphi 0, %s287
      %s304 = sphi 0, %s288
    $region4: #{tpu_custom_call.1} parent=1 // loop_header_branch
      %31 = sbr.rel (%p29) target = $region8
    $region5: #{tpu_custom_call.1} parent=1 // loop_body
      %s33 = ssub.s32 %s28, 1
      %s34 = ssub.s32 %s28, 2
      %s35 = sadd.s32 %s28, 1
      %s36 = ssub.s32 %s28, %s35
      %p37 = scmp.eq.s32.totalorder %s36, 0
      %s39 = sadd.s32 %s38, 1
      %s40 = scalar_select %p37, %s38, %s39
      %p43 = pneg %p37
      %p44 = scmp.eq.s32.totalorder %s28, 1
      %p45 = por %p43, %p44
      %p46 = scmp.ne.s32.totalorder %s38, %s41
      %p47 = scmp.eq.s32.totalorder %s28, 0
      %p48 = por %p46, %p47
      %p49 = scmp.ne.s32.totalorder %s38, %s41
      %p50 = scmp.eq.s32.totalorder %s33, 1
      %p51 = por %p49, %p50
      %p52 = scmp.ne.s32.totalorder %s41, %s42
      %p53 = scmp.eq.s32.totalorder %s33, 0
      %p54 = por %p52, %p53
      %p55 = scmp.ne.s32.totalorder %s41, %s42
      %p56 = scmp.eq.s32.totalorder %s34, 1
      %p57 = por %p55, %p56
      %p59 = scmp.ne.s32.totalorder %s42, %s58
      %p60 = scmp.eq.s32.totalorder %s34, 0
      %p61 = por %p59, %p60
      %s62 = ssub.s32 %s28, %s35
      %p63 = scmp.eq.s32.totalorder %s62, 0
      %s65 = sadd.s32 %s64, 1
      %s66 = scalar_select %p63, %s64, %s65
      %p69 = pneg %p63
      %p70 = scmp.eq.s32.totalorder %s28, 1
      %p71 = por %p69, %p70
      %p72 = scmp.ne.s32.totalorder %s64, %s67
      %p73 = scmp.eq.s32.totalorder %s28, 0
      %p74 = por %p72, %p73
      %p75 = scmp.ne.s32.totalorder %s64, %s67
      %p76 = scmp.eq.s32.totalorder %s33, 1
      %p77 = por %p75, %p76
      %p78 = scmp.ne.s32.totalorder %s67, %s68
      %p79 = scmp.eq.s32.totalorder %s33, 0
      %p80 = por %p78, %p79
      %p81 = scmp.ne.s32.totalorder %s67, %s68
      %p82 = scmp.eq.s32.totalorder %s34, 1
      %p83 = por %p81, %p82
      %p85 = scmp.ne.s32.totalorder %s68, %s84
      %p86 = scmp.eq.s32.totalorder %s34, 0
      %p87 = por %p85, %p86
      %s88 = ssub.s32 %s28, %s35
      %p89 = scmp.eq.s32.totalorder %s88, 0
      %s91 = sadd.s32 %s90, 1
      %s92 = scalar_select %p89, %s90, %s91
      %p95 = pneg %p89
      %p96 = scmp.eq.s32.totalorder %s28, 1
      %p97 = por %p95, %p96
      %p98 = scmp.ne.s32.totalorder %s90, %s93
      %p99 = scmp.eq.s32.totalorder %s28, 0
      %p100 = por %p98, %p99
      %p101 = scmp.ne.s32.totalorder %s90, %s93
      %p102 = scmp.eq.s32.totalorder %s33, 1
      %p103 = por %p101, %p102
      %p104 = scmp.ne.s32.totalorder %s93, %s94
      %p105 = scmp.eq.s32.totalorder %s33, 0
      %p106 = por %p104, %p105
      %p107 = scmp.ne.s32.totalorder %s93, %s94
      %p108 = scmp.eq.s32.totalorder %s34, 1
      %p109 = por %p107, %p108
      %p111 = scmp.ne.s32.totalorder %s94, %s110
      %p112 = scmp.eq.s32.totalorder %s34, 0
      %p113 = por %p111, %p112
      %s115 = sadd.s32 %s114, 1
      %p118 = scmp.eq.s32.totalorder %s28, 1
      %p119 = scmp.ne.s32.totalorder %s114, %s116
      %p120 = scmp.eq.s32.totalorder %s28, 0
      %p121 = por %p119, %p120
      %p122 = scmp.ne.s32.totalorder %s114, %s116
      %p123 = scmp.eq.s32.totalorder %s33, 1
      %p124 = por %p122, %p123
      %p125 = scmp.ne.s32.totalorder %s116, %s117
      %p126 = scmp.eq.s32.totalorder %s33, 0
      %p127 = por %p125, %p126
      %p128 = scmp.ne.s32.totalorder %s116, %s117
      %p129 = scmp.eq.s32.totalorder %s34, 1
      %p130 = por %p128, %p129
      %p132 = scmp.ne.s32.totalorder %s117, %s131
      %p133 = scmp.eq.s32.totalorder %s34, 0
      %p134 = por %p132, %p133
      %s136 = sadd.s32 %s135, 1
      %p139 = scmp.eq.s32.totalorder %s28, 1
      %p140 = scmp.ne.s32.totalorder %s135, %s137
      %p141 = scmp.eq.s32.totalorder %s28, 0
      %p142 = por %p140, %p141
      %p143 = scmp.ne.s32.totalorder %s135, %s137
      %p144 = scmp.eq.s32.totalorder %s33, 1
      %p145 = por %p143, %p144
      %p146 = scmp.ne.s32.totalorder %s137, %s138
      %p147 = scmp.eq.s32.totalorder %s33, 0
      %p148 = por %p146, %p147
      %p149 = scmp.ne.s32.totalorder %s137, %s138
      %p150 = scmp.eq.s32.totalorder %s34, 1
      %p151 = por %p149, %p150
      %p153 = scmp.ne.s32.totalorder %s138, %s152
      %p154 = scmp.eq.s32.totalorder %s34, 0
      %p155 = por %p153, %p154
      %s157 = sadd.s32 %s156, 1
      %p160 = scmp.eq.s32.totalorder %s28, 1
      %p161 = scmp.ne.s32.totalorder %s156, %s158
      %p162 = scmp.eq.s32.totalorder %s28, 0
      %p163 = por %p161, %p162
      %p164 = scmp.ne.s32.totalorder %s156, %s158
      %p165 = scmp.eq.s32.totalorder %s33, 1
      %p166 = por %p164, %p165
      %p167 = scmp.ne.s32.totalorder %s158, %s159
      %p168 = scmp.eq.s32.totalorder %s33, 0
      %p169 = por %p167, %p168
      %p170 = scmp.ne.s32.totalorder %s158, %s159
      %p171 = scmp.eq.s32.totalorder %s34, 1
      %p172 = por %p170, %p171
      %p174 = scmp.ne.s32.totalorder %s159, %s173
      %p175 = scmp.eq.s32.totalorder %s34, 0
      %p176 = por %p174, %p175
      %s178 = sadd.s32 %s177, 1
      %p181 = scmp.eq.s32.totalorder %s28, 1
      %p182 = scmp.ne.s32.totalorder %s177, %s179
      %p183 = scmp.eq.s32.totalorder %s28, 0
      %p184 = por %p182, %p183
      %p185 = scmp.ne.s32.totalorder %s177, %s179
      %p186 = scmp.eq.s32.totalorder %s33, 1
      %p187 = por %p185, %p186
      %p188 = scmp.ne.s32.totalorder %s179, %s180
      %p189 = scmp.eq.s32.totalorder %s33, 0
      %p190 = por %p188, %p189
      %p191 = scmp.ne.s32.totalorder %s179, %s180
      %p192 = scmp.eq.s32.totalorder %s34, 1
      %p193 = por %p191, %p192
      %p195 = scmp.ne.s32.totalorder %s180, %s194
      %p196 = scmp.eq.s32.totalorder %s34, 0
      %p197 = por %p195, %p196
      %s199 = sadd.s32 %s198, 1
      %p202 = scmp.eq.s32.totalorder %s28, 1
      %p203 = scmp.ne.s32.totalorder %s198, %s200
      %p204 = scmp.eq.s32.totalorder %s28, 0
      %p205 = por %p203, %p204
      %p206 = scmp.ne.s32.totalorder %s198, %s200
      %p207 = scmp.eq.s32.totalorder %s33, 1
      %p208 = por %p206, %p207
      %p209 = scmp.ne.s32.totalorder %s200, %s201
      %p210 = scmp.eq.s32.totalorder %s33, 0
      %p211 = por %p209, %p210
      %p212 = scmp.ne.s32.totalorder %s200, %s201
      %p213 = scmp.eq.s32.totalorder %s34, 1
      %p214 = por %p212, %p213
      %p216 = scmp.ne.s32.totalorder %s201, %s215
      %p217 = scmp.eq.s32.totalorder %s34, 0
      %p218 = por %p216, %p217
      %s220 = sadd.s32 %s219, 1
      %p223 = scmp.eq.s32.totalorder %s28, 1
      %p224 = scmp.ne.s32.totalorder %s219, %s221
      %p225 = scmp.eq.s32.totalorder %s28, 0
      %p226 = por %p224, %p225
      %p227 = scmp.ne.s32.totalorder %s219, %s221
      %p228 = scmp.eq.s32.totalorder %s33, 1
      %p229 = por %p227, %p228
      %p230 = scmp.ne.s32.totalorder %s221, %s222
      %p231 = scmp.eq.s32.totalorder %s33, 0
      %p232 = por %p230, %p231
      %p233 = scmp.ne.s32.totalorder %s221, %s222
      %p234 = scmp.eq.s32.totalorder %s34, 1
      %p235 = por %p233, %p234
      %p237 = scmp.ne.s32.totalorder %s222, %s236
      %p238 = scmp.eq.s32.totalorder %s34, 0
      %p239 = por %p237, %p238
      %s241 = sadd.s32 %s240, 1
      %p244 = scmp.eq.s32.totalorder %s28, 1
      %p245 = scmp.ne.s32.totalorder %s240, %s242
      %p246 = scmp.eq.s32.totalorder %s28, 0
      %p247 = por %p245, %p246
      %p248 = scmp.ne.s32.totalorder %s240, %s242
      %p249 = scmp.eq.s32.totalorder %s33, 1
      %p250 = por %p248, %p249
      %p251 = scmp.ne.s32.totalorder %s242, %s243
      %p252 = scmp.eq.s32.totalorder %s33, 0
      %p253 = por %p251, %p252
      %p254 = scmp.ne.s32.totalorder %s242, %s243
      %p255 = scmp.eq.s32.totalorder %s34, 1
      %p256 = por %p254, %p255
      %p258 = scmp.ne.s32.totalorder %s243, %s257
      %p259 = scmp.eq.s32.totalorder %s34, 0
      %p260 = por %p258, %p259
      %s262 = sadd.s32 %s261, 1
      %p265 = scmp.eq.s32.totalorder %s28, 1
      %p266 = scmp.ne.s32.totalorder %s261, %s263
      %p267 = scmp.eq.s32.totalorder %s28, 0
      %p268 = por %p266, %p267
      %p269 = scmp.ne.s32.totalorder %s261, %s263
      %p270 = scmp.eq.s32.totalorder %s33, 1
      %p271 = por %p269, %p270
      %p272 = scmp.ne.s32.totalorder %s263, %s264
      %p273 = scmp.eq.s32.totalorder %s33, 0
      %p274 = por %p272, %p273
      %p275 = scmp.ne.s32.totalorder %s263, %s264
      %p276 = scmp.eq.s32.totalorder %s34, 1
      %p277 = por %p275, %p276
      %p279 = scmp.ne.s32.totalorder %s264, %s278
      %p280 = scmp.eq.s32.totalorder %s34, 0
      %p281 = por %p279, %p280
      %s282 = ssub.s32 %s28, %s35
      %p283 = scmp.eq.s32.totalorder %s282, 0
      %s285 = sadd.s32 %s284, 1
      %s286 = scalar_select %p283, %s284, %s285
      %p289 = pneg %p283
      %p290 = scmp.eq.s32.totalorder %s28, 1
      %p291 = por %p289, %p290
      %p292 = scmp.ne.s32.totalorder %s284, %s287
      %p293 = scmp.eq.s32.totalorder %s28, 0
      %p294 = por %p292, %p293
      %p295 = scmp.ne.s32.totalorder %s284, %s287
      %p296 = scmp.eq.s32.totalorder %s33, 1
      %p297 = por %p295, %p296
      %p298 = scmp.ne.s32.totalorder %s287, %s288
      %p299 = scmp.eq.s32.totalorder %s33, 0
      %p300 = por %p298, %p299
      %p301 = scmp.ne.s32.totalorder %s287, %s288
      %p302 = scmp.eq.s32.totalorder %s34, 1
      %p303 = por %p301, %p302
      %p305 = scmp.ne.s32.totalorder %s288, %s304
      %p306 = scmp.eq.s32.totalorder %s34, 0
      %p307 = por %p305, %p306
      %p308 = scmp.le.s32.totalorder 1, %s28
      %p309 = scmp.lt.s32.totalorder %s28, 3
      %p310 = pnand %p308, %p309
      %p311 = pneg %p310
      // Predicated region
      $region9: #{tpu_custom_call.1} parent=5 // pred_check
        _
      $region10: #{tpu_custom_call.1} parent=5 // pred_check_branch
        %313 = sbr.rel (%p310) target = $region12
      $region11: #{tpu_custom_call.1} parent=5 // pred_region
        %s314 = ssub.s32 %s28, 1
        // Predicated region
        $region13: #{tpu_custom_call.1} parent=11 // pred_check
          %p315 = pneg %p127
        $region14: #{tpu_custom_call.1} parent=11 // pred_check_branch
          %317 = sbr.rel (%p315) target = $region16
        $region15: #{tpu_custom_call.1} parent=11 // pred_region
          _
        $region16: #{tpu_custom_call.1} parent=11 // pred_fallthru
          _
        // Predicated region
        $region17: #{tpu_custom_call.1} parent=11 // pred_check
          %p318 = pneg %p148
        $region18: #{tpu_custom_call.1} parent=11 // pred_check_branch
          %320 = sbr.rel (%p318) target = $region20
        $region19: #{tpu_custom_call.1} parent=11 // pred_region
          %s322 = ssub.s32 16, 16
          %323 = vsyncadd [#allocation6], %s322
          %s325 = sshll.u32 [#allocation7], 4
          %s326 = int_to_ptr.vmem [resolvable:$true] %s325
          %328 = dma.hbm_to_vmem [thread:$0]  %s4, 16, %s326, [#allocation6]
        $region20: #{tpu_custom_call.1} parent=11 // pred_fallthru
          _
        // Predicated region
        $region21: #{tpu_custom_call.1} parent=11 // pred_check
          %p329 = pneg %p169
        $region22: #{tpu_custom_call.1} parent=11 // pred_check_branch
          %331 = sbr.rel (%p329) target = $region24
        $region23: #{tpu_custom_call.1} parent=11 // pred_region
          %s333 = ssub.s32 256, 256
          %334 = vsyncadd [#allocation9], %s333
          %s335 = sshll.u32 [#allocation8], 4
          %s336 = int_to_ptr.vmem [resolvable:$true] %s335
          %341 = dma.hbm_to_vmem [thread:$0]  %s5, 256, %s336, [#allocation9], 64, 64, 4
        $region24: #{tpu_custom_call.1} parent=11 // pred_fallthru
          _
        // Predicated region
        $region25: #{tpu_custom_call.1} parent=11 // pred_check
          %p342 = pneg %p190
        $region26: #{tpu_custom_call.1} parent=11 // pred_check_branch
          %344 = sbr.rel (%p342) target = $region28
        $region27: #{tpu_custom_call.1} parent=11 // pred_region
          %s346 = ssub.s32 16, 16
          %347 = vsyncadd [#allocation9], %s346
          %s349 = sshll.u32 [#allocation10], 4
          %s350 = int_to_ptr.vmem [resolvable:$true] %s349
          %352 = dma.hbm_to_vmem [thread:$0]  %s6, 16, %s350, [#allocation9]
        $region28: #{tpu_custom_call.1} parent=11 // pred_fallthru
          _
        // Predicated region
        $region29: #{tpu_custom_call.1} parent=11 // pred_check
          %p353 = pneg %p211
        $region30: #{tpu_custom_call.1} parent=11 // pred_check_branch
          %355 = sbr.rel (%p353) target = $region32
        $region31: #{tpu_custom_call.1} parent=11 // pred_region
          %s357 = ssub.s32 256, 256
          %358 = vsyncadd [#allocation12], %s357
          %s359 = sshll.u32 [#allocation11], 4
          %s360 = int_to_ptr.vmem [resolvable:$true] %s359
          %365 = dma.hbm_to_vmem [thread:$0]  %s7, 256, %s360, [#allocation12], 64, 64, 4
        $region32: #{tpu_custom_call.1} parent=11 // pred_fallthru
          _
        // Predicated region
        $region33: #{tpu_custom_call.1} parent=11 // pred_check
          %p366 = pneg %p232
        $region34: #{tpu_custom_call.1} parent=11 // pred_check_branch
          %368 = sbr.rel (%p366) target = $region36
        $region35: #{tpu_custom_call.1} parent=11 // pred_region
          %s370 = ssub.s32 16, 16
          %371 = vsyncadd [#allocation12], %s370
          %s373 = sshll.u32 [#allocation13], 4
          %s374 = int_to_ptr.vmem [resolvable:$true] %s373
          %376 = dma.hbm_to_vmem [thread:$0]  %s8, 16, %s374, [#allocation12]
        $region36: #{tpu_custom_call.1} parent=11 // pred_fallthru
          _
        // Predicated region
        $region37: #{tpu_custom_call.1} parent=11 // pred_check
          %p377 = pneg %p253
        $region38: #{tpu_custom_call.1} parent=11 // pred_check_branch
          %379 = sbr.rel (%p377) target = $region40
        $region39: #{tpu_custom_call.1} parent=11 // pred_region
          _
        $region40: #{tpu_custom_call.1} parent=11 // pred_fallthru
          _
        // Predicated region
        $region41: #{tpu_custom_call.1} parent=11 // pred_check
          %p380 = pneg %p274
        $region42: #{tpu_custom_call.1} parent=11 // pred_check_branch
          %382 = sbr.rel (%p380) target = $region44
        $region43: #{tpu_custom_call.1} parent=11 // pred_region
          _
        $region44: #{tpu_custom_call.1} parent=11 // pred_fallthru
          _
      $region12: #{tpu_custom_call.1} parent=5 // pred_fallthru
        _
      %p383 = scmp.lt.s32.totalorder %s28, 2
      // Predicated region
      $region45: #{tpu_custom_call.1} parent=5 // pred_check
        %p384 = pneg %p383
      $region46: #{tpu_custom_call.1} parent=5 // pred_check_branch
        %386 = sbr.rel (%p384) target = $region48
      $region47: #{tpu_custom_call.1} parent=5 // pred_region
        // Predicated region
        $region49: #{tpu_custom_call.1} parent=47 // pred_check
          %p387 = pneg %p48
        $region50: #{tpu_custom_call.1} parent=47 // pred_check_branch
          %389 = sbr.rel (%p387) target = $region52
        $region51: #{tpu_custom_call.1} parent=47 // pred_region
          %s390 = smul.u32 2, %s28
          %p391 = scmp.lt.s32.totalorder %s390, 3
          %s392 = scalar_select %p391, %s390, 3
          %s393 = smul.addr %s392, 8
          %s394 = scalar_lea.vmem %s0, %s393
          %s395 = smul.u32 2, %s28
        $region52: #{tpu_custom_call.1} parent=47 // pred_fallthru
          _
        // Predicated region
        $region53: #{tpu_custom_call.1} parent=47 // pred_check
          %p396 = pneg %p74
        $region54: #{tpu_custom_call.1} parent=47 // pred_check_branch
          %398 = sbr.rel (%p396) target = $region56
        $region55: #{tpu_custom_call.1} parent=47 // pred_region
          %s399 = sand.u32 %s64, 1
          %s400 = scalar_lea.sflag [#allocation3], %s399
          %s401 = sand.u32 %s64, 1
          %s402 = smul.addr %s401, 16
          %s403 = scalar_lea.vmem [#allocation2], %s402
          %s404 = smul.u32 2, %s28
          %s406 = ssub.s32 256, 256
          %407 = vsyncadd %s400, %s406
          %s408 = smul.addr %s404, 128
          %s409 = scalar_lea.hbm %s1, %s408
          %s410 = sshll.u32 %s403, 4
          %s411 = int_to_ptr.vmem [resolvable:$true] %s410
          %416 = dma.hbm_to_vmem [thread:$0]  %s409, 256, %s411, %s400, 128, 128, 8
        $region56: #{tpu_custom_call.1} parent=47 // pred_fallthru
          _
        // Predicated region
        $region57: #{tpu_custom_call.1} parent=47 // pred_check
          %p417 = pneg %p100
        $region58: #{tpu_custom_call.1} parent=47 // pred_check_branch
          %419 = sbr.rel (%p417) target = $region60
        $region59: #{tpu_custom_call.1} parent=47 // pred_region
          %s420 = sand.u32 %s28, 1
          %s421 = scalar_lea.sflag [#allocation6], %s420
          %s422 = sand.u32 %s90, 1
          %s423 = smul.addr %s422, 16
          %s424 = scalar_lea.vmem [#allocation5], %s423
          %s425 = smul.u32 2, %s28
          %s427 = ssub.s32 256, 256
          %428 = vsyncadd %s421, %s427
          %s429 = smul.addr %s425, 128
          %s430 = scalar_lea.hbm %s2, %s429
          %s431 = sshll.u32 %s424, 4
          %s432 = int_to_ptr.vmem [resolvable:$true] %s431
          %437 = dma.hbm_to_vmem [thread:$0]  %s430, 256, %s432, %s421, 128, 128, 8
        $region60: #{tpu_custom_call.1} parent=47 // pred_fallthru
          _
      $region48: #{tpu_custom_call.1} parent=5 // pred_fallthru
        _
      %p438 = scmp.le.s32.totalorder 1, %s28
      %p439 = scmp.lt.s32.totalorder %s28, 3
      %p440 = pnand %p438, %p439
      %p441 = pneg %p440
      // Predicated region
      $region61: #{tpu_custom_call.1} parent=5 // pred_check
        _
      $region62: #{tpu_custom_call.1} parent=5 // pred_check_branch
        %443 = sbr.rel (%p440) target = $region64
      $region63: #{tpu_custom_call.1} parent=5 // pred_region
        %s444 = ssub.s32 %s28, 1
        %s445 = sand.u32 %s67, 1
        %s446 = scalar_lea.sflag [#allocation3], %s445
        %s447 = sand.u32 %s67, 1
        %s448 = smul.addr %s447, 16
        %s449 = scalar_lea.vmem [#allocation2], %s448
        // Predicated region
        $region65: #{tpu_custom_call.1} parent=63 // pred_check
          %p450 = pneg %p80
        $region66: #{tpu_custom_call.1} parent=63 // pred_check_branch
          %452 = sbr.rel (%p450) target = $region68
        $region67: #{tpu_custom_call.1} parent=63 // pred_region
          %453 = dma.done %s446, 256
        $region68: #{tpu_custom_call.1} parent=63 // pred_fallthru
          _
        %s454 = sand.u32 %s33, 1
        %s455 = scalar_lea.sflag [#allocation6], %s454
        %s456 = sand.u32 %s93, 1
        %s457 = smul.addr %s456, 16
        %s458 = scalar_lea.vmem [#allocation5], %s457
        // Predicated region
        $region69: #{tpu_custom_call.1} parent=63 // pred_check
          %p459 = pneg %p106
        $region70: #{tpu_custom_call.1} parent=63 // pred_check_branch
          %461 = sbr.rel (%p459) target = $region72
        $region71: #{tpu_custom_call.1} parent=63 // pred_region
          %462 = dma.done %s455, 256
        $region72: #{tpu_custom_call.1} parent=63 // pred_fallthru
          _
        // Predicated region
        $region73: #{tpu_custom_call.1} parent=63 // pred_check
          %p463 = pneg %p148
        $region74: #{tpu_custom_call.1} parent=63 // pred_check_branch
          %465 = sbr.rel (%p463) target = $region76
        $region75: #{tpu_custom_call.1} parent=63 // pred_region
          %466 = dma.done [#allocation6], 16
        $region76: #{tpu_custom_call.1} parent=63 // pred_fallthru
          _
        // Predicated region
        $region77: #{tpu_custom_call.1} parent=63 // pred_check
          %p467 = pneg %p169
        $region78: #{tpu_custom_call.1} parent=63 // pred_check_branch
          %469 = sbr.rel (%p467) target = $region80
        $region79: #{tpu_custom_call.1} parent=63 // pred_region
          %470 = dma.done [#allocation9], 256
        $region80: #{tpu_custom_call.1} parent=63 // pred_fallthru
          _
        // Predicated region
        $region81: #{tpu_custom_call.1} parent=63 // pred_check
          %p471 = pneg %p190
        $region82: #{tpu_custom_call.1} parent=63 // pred_check_branch
          %473 = sbr.rel (%p471) target = $region84
        $region83: #{tpu_custom_call.1} parent=63 // pred_region
          %474 = dma.done [#allocation9], 16
        $region84: #{tpu_custom_call.1} parent=63 // pred_fallthru
          _
        // Predicated region
        $region85: #{tpu_custom_call.1} parent=63 // pred_check
          %p475 = pneg %p211
        $region86: #{tpu_custom_call.1} parent=63 // pred_check_branch
          %477 = sbr.rel (%p475) target = $region88
        $region87: #{tpu_custom_call.1} parent=63 // pred_region
          %478 = dma.done [#allocation12], 256
        $region88: #{tpu_custom_call.1} parent=63 // pred_fallthru
          _
        // Predicated region
        $region89: #{tpu_custom_call.1} parent=63 // pred_check
          %p479 = pneg %p232
        $region90: #{tpu_custom_call.1} parent=63 // pred_check_branch
          %481 = sbr.rel (%p479) target = $region92
        $region91: #{tpu_custom_call.1} parent=63 // pred_region
          %482 = dma.done [#allocation12], 16
        $region92: #{tpu_custom_call.1} parent=63 // pred_fallthru
          _
        %s483 = smul.u32 2, %s33
        %p484 = scmp.lt.s32.totalorder %s483, 3
        %s485 = scalar_select %p484, %s483, 3
        %s486 = smul.addr %s485, 8
        %s487 = scalar_lea.vmem %s0, %s486
        %p488 = pneg %p54
        %p489 = pneg %p51
        %s490 = sand.u32 %s67, 1
        %s491 = scalar_lea.sflag [#allocation3], %s490
        %s492 = sand.u32 %s67, 1
        %s493 = smul.addr %s492, 16
        %s494 = scalar_lea.vmem [#allocation2], %s493
        %p495 = pneg %p80
        %p496 = pneg %p77
        %s497 = sand.u32 %s33, 1
        %s498 = scalar_lea.sflag [#allocation6], %s497
        %s499 = sand.u32 %s93, 1
        %s500 = smul.addr %s499, 16
        %s501 = scalar_lea.vmem [#allocation5], %s500
        %p502 = pneg %p106
        %p503 = pneg %p103
        %p504 = pneg %p127
        %p505 = pneg %p124
        %p506 = pneg %p148
        %p507 = pneg %p145
        %p508 = pneg %p169
        %p509 = pneg %p166
        %p510 = pneg %p190
        %p511 = pneg %p187
        %p512 = pneg %p211
        %p513 = pneg %p208
        %p514 = pneg %p232
        %p515 = pneg %p229
        %p516 = pneg %p253
        %p517 = pneg %p250
        %p518 = pneg %p274
        %p519 = pneg %p271
        %p520 = pneg %p300
        %p521 = pneg %p297
        %s522 = sand.u32 %s287, 1
        %s523 = scalar_lea.sflag [#allocation4], %s522
        %s524 = sand.u32 %s287, 1
        %s525 = smul.addr %s524, 16
        %s526 = scalar_lea.vmem [#allocation14], %s525
        %s527 = smul.u32 2, %s33
        %p528 = scmp.lt.s32.totalorder %s527, 3
        %s529 = scalar_select %p528, %s527, 3
        %s530 = smul.addr %s529, 8
        %s531 = scalar_lea.vmem %s0, %s530
        %s532 = smul.u32 2, %s33
        %s533 = smul.u32 2, %s33
        %s534 = smul.u32 2, %s33
        %s535 = smul.u32 2, %s33
        %v537 = vld [vmem:[%s531] sm:$0xff]
        %v538 = vld [vmem:[%s531 + $0x8] sm:$0xff]
        %v539 = vpack.c.bf16 %v538, %v537
        %v540 = vld [vmem:[%s449] sm:$0xff]
        %v541 = vld [vmem:[%s449 + $0x8] sm:$0xff]
        %v542 = vpack.c.bf16 %v541, %v540
        %v543 = vld [vmem:[%s458] sm:$0xff]
        %v544 = vld [vmem:[%s458 + $0x8] sm:$0xff]
        %v545 = vpack.c.bf16 %v544, %v543
        %v546 = vld [vmem:[%s3] sm:$0xf]
        %v547 = vld [vmem:[%s3 + $0x4] sm:$0xf]
        %v548 = vld [vmem:[%s3 + $0x8] sm:$0xf]
        %v549 = vld [vmem:[%s3 + $0xc] sm:$0xf]
        %v550 = vld [vmem:[#allocation7] sm:$0x1]
        %v552 = vlaneseq
        %v553 = vshrl.u32 %v552, 7
        %v554 = vsub.s32 0, %v553
        %v555 = vrot.slane %v550, %v554
        %v561 = vunpack.c.l.b16 %v546
        %v562 = vunpack.c.l.b16 %v547
        %v563 = vunpack.c.l.b16 %v548
        %v564 = vunpack.c.l.b16 %v549
        %v565 = vpack.c.b16 %v562, %v561
        %v566 = vpack.c.b16 %v564, %v563
        %vm569 = vcmask 261120
        %v571 = vsel %vm569, %v539, 0
        %573 = vmatprep.subr.bf16.mxu0 0
        %574 = vmatpush1.bf16.msra.mxu0 0
        %575 = vmatprep.subr.bf16.mxu0 0
        %576 = vmatpush1.bf16.msra.mxu0 0
        %577 = vmatprep.subr.bf16.mxu0 0
        %578 = vmatpush1.bf16.msra.mxu0 0
        %579 = vmatprep.subr.bf16.mxu0 0
        %580 = vmatpush1.bf16.msra.mxu0 0
        %581 = vmatprep.subr.bf16.mxu0 0
        %582 = vmatpush1.bf16.msra.mxu0 0
        %583 = vmatprep.subr.bf16.mxu0 0
        %584 = vmatpush1.bf16.msra.mxu0 0
        %585 = vmatprep.subr.bf16.mxu0 0
        %586 = vmatpush1.bf16.msra.mxu0 %v566
        %587 = vmatprep.subr.bf16.mxu0 0
        %588 = vmatpush1.bf16.msra.mxu0 %v565
        %589 = vmatprep.subr.bf16.mxu0 0
        %590 = vmatpush2.bf16.msra.mxu0 0
        %591 = vmatprep.subr.bf16.mxu0 0
        %592 = vmatpush2.bf16.msra.mxu0 0
        %593 = vmatprep.subr.bf16.mxu0 0
        %594 = vmatpush2.bf16.msra.mxu0 0
        %595 = vmatprep.subr.bf16.mxu0 0
        %596 = vmatpush2.bf16.msra.mxu0 0
        %597 = vmatprep.subr.bf16.mxu0 0
        %598 = vmatpush2.bf16.msra.mxu0 0
        %599 = vmatprep.subr.bf16.mxu0 0
        %600 = vmatpush2.bf16.msra.mxu0 0
        %601 = vmatprep.subr.bf16.mxu0 0
        %602 = vmatpush2.bf16.msra.mxu0 0
        %603 = vmatprep.subr.bf16.mxu0 0
        %604 = vmatpush2.bf16.msra.mxu0 0
        %605 = vmatprep.mubr.bf16.mxu0 0
        %606 = vmatmul.mubr.bf16.gmra.mxu0 %v571
        %v607 = vpop.f32.mrf.mxu0
        %v608 = vadd.f32 %v555, %v607
        %v609 = vpop.f32.mrf.mxu0
        %v610 = vpop.f32.mrf.mxu0
        %v611 = vadd.f32 %v555, %v610
        %v612 = vpop.f32.mrf.mxu0
        %613 = vdwg.mxu0
        %v614 = vld [vmem:[#allocation8] sm:$0xf]
        %v615 = vld [vmem:[#allocation8 + $0x4] sm:$0xf]
        %v616 = vld [vmem:[#allocation8 + $0x8] sm:$0xf]
        %v617 = vld [vmem:[#allocation8 + $0xc] sm:$0xf]
        %v618 = vld [vmem:[#allocation10] sm:$0x1]
        %v620 = vlaneseq
        %v621 = vshrl.u32 %v620, 7
        %v622 = vsub.s32 0, %v621
        %v623 = vrot.slane %v618, %v622
        %v629 = vunpack.c.l.b16 %v614
        %v630 = vunpack.c.l.b16 %v615
        %v631 = vunpack.c.l.b16 %v616
        %v632 = vunpack.c.l.b16 %v617
        %v633 = vpack.c.b16 %v630, %v629
        %v634 = vpack.c.b16 %v632, %v631
        %v638 = vsel %vm569, %v542, 0
        %640 = vmatprep.subr.bf16.mxu0 0
        %641 = vmatpush1.bf16.msra.mxu0 0
        %642 = vmatprep.subr.bf16.mxu0 0
        %643 = vmatpush1.bf16.msra.mxu0 0
        %644 = vmatprep.subr.bf16.mxu0 0
        %645 = vmatpush1.bf16.msra.mxu0 0
        %646 = vmatprep.subr.bf16.mxu0 0
        %647 = vmatpush1.bf16.msra.mxu0 0
        %648 = vmatprep.subr.bf16.mxu0 0
        %649 = vmatpush1.bf16.msra.mxu0 0
        %650 = vmatprep.subr.bf16.mxu0 0
        %651 = vmatpush1.bf16.msra.mxu0 0
        %652 = vmatprep.subr.bf16.mxu0 0
        %653 = vmatpush1.bf16.msra.mxu0 %v634
        %654 = vmatprep.subr.bf16.mxu0 0
        %655 = vmatpush1.bf16.msra.mxu0 %v633
        %656 = vmatprep.subr.bf16.mxu0 0
        %657 = vmatpush2.bf16.msra.mxu0 0
        %658 = vmatprep.subr.bf16.mxu0 0
        %659 = vmatpush2.bf16.msra.mxu0 0
        %660 = vmatprep.subr.bf16.mxu0 0
        %661 = vmatpush2.bf16.msra.mxu0 0
        %662 = vmatprep.subr.bf16.mxu0 0
        %663 = vmatpush2.bf16.msra.mxu0 0
        %664 = vmatprep.subr.bf16.mxu0 0
        %665 = vmatpush2.bf16.msra.mxu0 0
        %666 = vmatprep.subr.bf16.mxu0 0
        %667 = vmatpush2.bf16.msra.mxu0 0
        %668 = vmatprep.subr.bf16.mxu0 0
        %669 = vmatpush2.bf16.msra.mxu0 0
        %670 = vmatprep.subr.bf16.mxu0 0
        %671 = vmatpush2.bf16.msra.mxu0 0
        %672 = vmatprep.mubr.bf16.mxu0 0
        %673 = vmatmul.mubr.bf16.gmra.mxu0 %v638
        %v674 = vpop.f32.mrf.mxu0
        %v675 = vadd.f32 %v623, %v674
        %v676 = vpop.f32.mrf.mxu0
        %v677 = vpop.f32.mrf.mxu0
        %v678 = vadd.f32 %v623, %v677
        %v679 = vpop.f32.mrf.mxu0
        %680 = vdwg.mxu0
        %v681 = vld [vmem:[#allocation11] sm:$0xf]
        %v682 = vld [vmem:[#allocation11 + $0x4] sm:$0xf]
        %v683 = vld [vmem:[#allocation11 + $0x8] sm:$0xf]
        %v684 = vld [vmem:[#allocation11 + $0xc] sm:$0xf]
        %v685 = vld [vmem:[#allocation13] sm:$0x1]
        %v687 = vlaneseq
        %v688 = vshrl.u32 %v687, 7
        %v689 = vsub.s32 0, %v688
        %v690 = vrot.slane %v685, %v689
        %v696 = vunpack.c.l.b16 %v681
        %v697 = vunpack.c.l.b16 %v682
        %v698 = vunpack.c.l.b16 %v683
        %v699 = vunpack.c.l.b16 %v684
        %v700 = vpack.c.b16 %v697, %v696
        %v701 = vpack.c.b16 %v699, %v698
        %v705 = vsel %vm569, %v545, 0
        %707 = vmatprep.subr.bf16.mxu0 0
        %708 = vmatpush1.bf16.msra.mxu0 0
        %709 = vmatprep.subr.bf16.mxu0 0
        %710 = vmatpush1.bf16.msra.mxu0 0
        %711 = vmatprep.subr.bf16.mxu0 0
        %712 = vmatpush1.bf16.msra.mxu0 0
        %713 = vmatprep.subr.bf16.mxu0 0
        %714 = vmatpush1.bf16.msra.mxu0 0
        %715 = vmatprep.subr.bf16.mxu0 0
        %716 = vmatpush1.bf16.msra.mxu0 0
        %717 = vmatprep.subr.bf16.mxu0 0
        %718 = vmatpush1.bf16.msra.mxu0 0
        %719 = vmatprep.subr.bf16.mxu0 0
        %720 = vmatpush1.bf16.msra.mxu0 %v701
        %721 = vmatprep.subr.bf16.mxu0 0
        %722 = vmatpush1.bf16.msra.mxu0 %v700
        %723 = vmatprep.subr.bf16.mxu0 0
        %724 = vmatpush2.bf16.msra.mxu0 0
        %725 = vmatprep.subr.bf16.mxu0 0
        %726 = vmatpush2.bf16.msra.mxu0 0
        %727 = vmatprep.subr.bf16.mxu0 0
        %728 = vmatpush2.bf16.msra.mxu0 0
        %729 = vmatprep.subr.bf16.mxu0 0
        %730 = vmatpush2.bf16.msra.mxu0 0
        %731 = vmatprep.subr.bf16.mxu0 0
        %732 = vmatpush2.bf16.msra.mxu0 0
        %733 = vmatprep.subr.bf16.mxu0 0
        %734 = vmatpush2.bf16.msra.mxu0 0
        %735 = vmatprep.subr.bf16.mxu0 0
        %736 = vmatpush2.bf16.msra.mxu0 0
        %737 = vmatprep.subr.bf16.mxu0 0
        %738 = vmatpush2.bf16.msra.mxu0 0
        %739 = vmatprep.mubr.bf16.mxu0 0
        %740 = vmatmul.mubr.bf16.gmra.mxu0 %v705
        %v741 = vpop.f32.mrf.mxu0
        %v742 = vadd.f32 %v690, %v741
        %v743 = vpop.f32.mrf.mxu0
        %v744 = vpop.f32.mrf.mxu0
        %v745 = vadd.f32 %v690, %v744
        %v746 = vpop.f32.mrf.mxu0
        %747 = vdwg.mxu0
        %v748 = vpack.c.bf16 %v608, %v608
        %v749 = vpack.c.bf16 %v611, %v611
        %v750 = vpack.c.bf16 %v675, %v675
        %v751 = vpack.c.bf16 %v678, %v678
        %v752 = vpack.c.bf16 %v742, %v742
        %v753 = vpack.c.bf16 %v745, %v745
        %vm754 = vcmask 130048
        %v756 = vsel %vm754, %v748, 0
        %v759 = vsel %vm754, %v750, 0
        %761 = vmatprep.subr.bf16.mxu0 0
        %762 = vmatpush1.bf16.xpose.msra.mxu0 0
        %763 = vmatprep.subr.bf16.mxu0 0
        %764 = vmatpush1.bf16.xpose.msra.mxu0 0
        %765 = vmatprep.subr.bf16.mxu0 0
        %766 = vmatpush1.bf16.xpose.msra.mxu0 0
        %767 = vmatprep.subr.bf16.mxu0 0
        %768 = vmatpush1.bf16.xpose.msra.mxu0 0
        %769 = vmatprep.subr.bf16.mxu0 0
        %770 = vmatpush1.bf16.xpose.msra.mxu0 0
        %771 = vmatprep.subr.bf16.mxu0 0
        %772 = vmatpush1.bf16.xpose.msra.mxu0 0
        %773 = vmatprep.subr.bf16.mxu0 0
        %774 = vmatpush1.bf16.xpose.msra.mxu0 0
        %775 = vmatprep.subr.bf16.mxu0 0
        %776 = vmatpush1.bf16.xpose.msra.mxu0 %v759
        %777 = vmatprep.subr.bf16.mxu0 0
        %778 = vmatpush2.bf16.xpose.msra.mxu0 0
        %779 = vmatprep.subr.bf16.mxu0 0
        %780 = vmatpush2.bf16.xpose.msra.mxu0 0
        %781 = vmatprep.subr.bf16.mxu0 0
        %782 = vmatpush2.bf16.xpose.msra.mxu0 0
        %783 = vmatprep.subr.bf16.mxu0 0
        %784 = vmatpush2.bf16.xpose.msra.mxu0 0
        %785 = vmatprep.subr.bf16.mxu0 0
        %786 = vmatpush2.bf16.xpose.msra.mxu0 0
        %787 = vmatprep.subr.bf16.mxu0 0
        %788 = vmatpush2.bf16.xpose.msra.mxu0 0
        %789 = vmatprep.subr.bf16.mxu0 0
        %790 = vmatpush2.bf16.xpose.msra.mxu0 0
        %791 = vmatprep.subr.bf16.mxu0 0
        %792 = vmatpush2.bf16.xpose.msra.mxu0 0
        %793 = vmatprep.mubr.bf16.mxu0 0
        %794 = vmatmul.mubr.bf16.gmra.mxu0 %v756
        %v795 = vpop.f32.mrf.mxu0
        %v796 = vadd.f32 0.0, %v795
        %v797 = vpop.f32.mrf.mxu0
        %v798 = vpop.f32.mrf.mxu0
        %v799 = vpop.f32.mrf.mxu0
        %800 = vdwg.mxu0
        %v802 = vsel %vm754, %v749, 0
        %v805 = vsel %vm754, %v751, 0
        %807 = vmatprep.subr.bf16.mxu0 0
        %808 = vmatpush1.bf16.xpose.msra.mxu0 0
        %809 = vmatprep.subr.bf16.mxu0 0
        %810 = vmatpush1.bf16.xpose.msra.mxu0 0
        %811 = vmatprep.subr.bf16.mxu0 0
        %812 = vmatpush1.bf16.xpose.msra.mxu0 0
        %813 = vmatprep.subr.bf16.mxu0 0
        %814 = vmatpush1.bf16.xpose.msra.mxu0 0
        %815 = vmatprep.subr.bf16.mxu0 0
        %816 = vmatpush1.bf16.xpose.msra.mxu0 0
        %817 = vmatprep.subr.bf16.mxu0 0
        %818 = vmatpush1.bf16.xpose.msra.mxu0 0
        %819 = vmatprep.subr.bf16.mxu0 0
        %820 = vmatpush1.bf16.xpose.msra.mxu0 0
        %821 = vmatprep.subr.bf16.mxu0 0
        %822 = vmatpush1.bf16.xpose.msra.mxu0 %v805
        %823 = vmatprep.subr.bf16.mxu0 0
        %824 = vmatpush2.bf16.xpose.msra.mxu0 0
        %825 = vmatprep.subr.bf16.mxu0 0
        %826 = vmatpush2.bf16.xpose.msra.mxu0 0
        %827 = vmatprep.subr.bf16.mxu0 0
        %828 = vmatpush2.bf16.xpose.msra.mxu0 0
        %829 = vmatprep.subr.bf16.mxu0 0
        %830 = vmatpush2.bf16.xpose.msra.mxu0 0
        %831 = vmatprep.subr.bf16.mxu0 0
        %832 = vmatpush2.bf16.xpose.msra.mxu0 0
        %833 = vmatprep.subr.bf16.mxu0 0
        %834 = vmatpush2.bf16.xpose.msra.mxu0 0
        %835 = vmatprep.subr.bf16.mxu0 0
        %836 = vmatpush2.bf16.xpose.msra.mxu0 0
        %837 = vmatprep.subr.bf16.mxu0 0
        %838 = vmatpush2.bf16.xpose.msra.mxu0 0
        %839 = vmatprep.mubr.bf16.mxu0 0
        %840 = vmatmul.mubr.bf16.gmra.mxu0 %v802
        %v841 = vpop.f32.mrf.mxu0
        %v842 = vadd.f32 0.0, %v841
        %v843 = vpop.f32.mrf.mxu0
        %v844 = vpop.f32.mrf.mxu0
        %v845 = vpop.f32.mrf.mxu0
        %846 = vdwg.mxu0
        %vm847 = vcmask 64512
        %v848 = vsel %vm847, %v796, -inf
        %849 = vmax.xlane.f32.xlu0 %v848
        %v850 = vpop.xlane.xlu0 %849
        %v851 = vsel %vm847, %v842, -inf
        %852 = vmax.xlane.f32.xlu0 %v851
        %v853 = vpop.xlane.xlu0 %852
        %v854 = vsub.f32 %v796, %v850
        %v855 = vsub.f32 %v842, %v853
        %v856 = vmul.f32 %v854, 1.442695
        %v857 = vpow.pop %v856
        %v858 = vmul.f32 %v855, 1.442695
        %v859 = vpow.pop %v858
        %v860 = vsel %vm847, %v857, 0.0
        %861 = vadd.xlane.f32.xlu0 %v860
        %v862 = vpop.xlane.xlu0 %861
        %v863 = vsel %vm847, %v859, 0.0
        %864 = vadd.xlane.f32.xlu0 %v863
        %v865 = vpop.xlane.xlu0 %864
        %v866 = vrcp.pop %v862
        %v867 = vrcp.pop %v865
        %v868 = vmul.f32 %v857, %v866
        %v869 = vmul.f32 %v859, %v867
        %v870 = vpack.c.bf16 %v868, %v868
        %v871 = vpack.c.bf16 %v869, %v869
        %v873 = vsel %vm847, %v870, 0
        %vm875 = vcmask 1043456
        %v877 = vsel %vm875, %v752, 0
        %879 = vmatprep.subr.bf16.mxu0 0
        %880 = vmatpush1.bf16.msra.mxu0 0
        %881 = vmatprep.subr.bf16.mxu0 0
        %882 = vmatpush1.bf16.msra.mxu0 0
        %883 = vmatprep.subr.bf16.mxu0 0
        %884 = vmatpush1.bf16.msra.mxu0 0
        %885 = vmatprep.subr.bf16.mxu0 0
        %886 = vmatpush1.bf16.msra.mxu0 0
        %887 = vmatprep.subr.bf16.mxu0 0
        %888 = vmatpush1.bf16.msra.mxu0 0
        %889 = vmatprep.subr.bf16.mxu0 0
        %890 = vmatpush1.bf16.msra.mxu0 0
        %891 = vmatprep.subr.bf16.mxu0 0
        %892 = vmatpush1.bf16.msra.mxu0 0
        %893 = vmatprep.subr.bf16.mxu0 0
        %894 = vmatpush1.bf16.msra.mxu0 %v877
        %895 = vmatprep.subr.bf16.mxu0 0
        %896 = vmatpush2.bf16.msra.mxu0 0
        %897 = vmatprep.subr.bf16.mxu0 0
        %898 = vmatpush2.bf16.msra.mxu0 0
        %899 = vmatprep.subr.bf16.mxu0 0
        %900 = vmatpush2.bf16.msra.mxu0 0
        %901 = vmatprep.subr.bf16.mxu0 0
        %902 = vmatpush2.bf16.msra.mxu0 0
        %903 = vmatprep.subr.bf16.mxu0 0
        %904 = vmatpush2.bf16.msra.mxu0 0
        %905 = vmatprep.subr.bf16.mxu0 0
        %906 = vmatpush2.bf16.msra.mxu0 0
        %907 = vmatprep.subr.bf16.mxu0 0
        %908 = vmatpush2.bf16.msra.mxu0 0
        %909 = vmatprep.subr.bf16.mxu0 0
        %910 = vmatpush2.bf16.msra.mxu0 0
        %911 = vmatprep.mubr.bf16.mxu0 0
        %912 = vmatmul.mubr.bf16.gmra.mxu0 %v873
        %v913 = vpop.f32.mrf.mxu0
        %v914 = vadd.f32 0.0, %v913
        %v915 = vpop.f32.mrf.mxu0
        %v916 = vpop.f32.mrf.mxu0
        %v917 = vpop.f32.mrf.mxu0
        %918 = vdwg.mxu0
        %v920 = vsel %vm847, %v871, 0
        %v923 = vsel %vm875, %v753, 0
        %925 = vmatprep.subr.bf16.mxu0 0
        %926 = vmatpush1.bf16.msra.mxu0 0
        %927 = vmatprep.subr.bf16.mxu0 0
        %928 = vmatpush1.bf16.msra.mxu0 0
        %929 = vmatprep.subr.bf16.mxu0 0
        %930 = vmatpush1.bf16.msra.mxu0 0
        %931 = vmatprep.subr.bf16.mxu0 0
        %932 = vmatpush1.bf16.msra.mxu0 0
        %933 = vmatprep.subr.bf16.mxu0 0
        %934 = vmatpush1.bf16.msra.mxu0 0
        %935 = vmatprep.subr.bf16.mxu0 0
        %936 = vmatpush1.bf16.msra.mxu0 0
        %937 = vmatprep.subr.bf16.mxu0 0
        %938 = vmatpush1.bf16.msra.mxu0 0
        %939 = vmatprep.subr.bf16.mxu0 0
        %940 = vmatpush1.bf16.msra.mxu0 %v923
        %941 = vmatprep.subr.bf16.mxu0 0
        %942 = vmatpush2.bf16.msra.mxu0 0
        %943 = vmatprep.subr.bf16.mxu0 0
        %944 = vmatpush2.bf16.msra.mxu0 0
        %945 = vmatprep.subr.bf16.mxu0 0
        %946 = vmatpush2.bf16.msra.mxu0 0
        %947 = vmatprep.subr.bf16.mxu0 0
        %948 = vmatpush2.bf16.msra.mxu0 0
        %949 = vmatprep.subr.bf16.mxu0 0
        %950 = vmatpush2.bf16.msra.mxu0 0
        %951 = vmatprep.subr.bf16.mxu0 0
        %952 = vmatpush2.bf16.msra.mxu0 0
        %953 = vmatprep.subr.bf16.mxu0 0
        %954 = vmatpush2.bf16.msra.mxu0 0
        %955 = vmatprep.subr.bf16.mxu0 0
        %956 = vmatpush2.bf16.msra.mxu0 0
        %957 = vmatprep.mubr.bf16.mxu0 0
        %958 = vmatmul.mubr.bf16.gmra.mxu0 %v920
        %v959 = vpop.f32.mrf.mxu0
        %v960 = vadd.f32 0.0, %v959
        %v961 = vpop.f32.mrf.mxu0
        %v962 = vpop.f32.mrf.mxu0
        %v963 = vpop.f32.mrf.mxu0
        %964 = vdwg.mxu0
        %v965 = vpack.c.bf16 %v960, %v914
        %v966 = vld [vmem:[%s9] sm:$0xf]
        %v967 = vld [vmem:[%s9 + $0x4] sm:$0xf]
        %969 = vrot.lane.b32.xlu0 %v748, 112
        %v970 = vpop.permute.xlu0 %969
        %972 = vrot.lane.b32.xlu0 %v750, 112
        %v973 = vpop.permute.xlu0 %972
        %v975 = vsel %vm754, %v970, 0
        %v978 = vsel %vm754, %v973, 0
        %980 = vmatprep.subr.bf16.mxu0 0
        %981 = vmatpush1.bf16.xpose.msra.mxu0 0
        %982 = vmatprep.subr.bf16.mxu0 0
        %983 = vmatpush1.bf16.xpose.msra.mxu0 0
        %984 = vmatprep.subr.bf16.mxu0 0
        %985 = vmatpush1.bf16.xpose.msra.mxu0 0
        %986 = vmatprep.subr.bf16.mxu0 0
        %987 = vmatpush1.bf16.xpose.msra.mxu0 0
        %988 = vmatprep.subr.bf16.mxu0 0
        %989 = vmatpush1.bf16.xpose.msra.mxu0 0
        %990 = vmatprep.subr.bf16.mxu0 0
        %991 = vmatpush1.bf16.xpose.msra.mxu0 0
        %992 = vmatprep.subr.bf16.mxu0 0
        %993 = vmatpush1.bf16.xpose.msra.mxu0 0
        %994 = vmatprep.subr.bf16.mxu0 0
        %995 = vmatpush1.bf16.xpose.msra.mxu0 %v978
        %996 = vmatprep.subr.bf16.mxu0 0
        %997 = vmatpush2.bf16.xpose.msra.mxu0 0
        %998 = vmatprep.subr.bf16.mxu0 0
        %999 = vmatpush2.bf16.xpose.msra.mxu0 0
        %1000 = vmatprep.subr.bf16.mxu0 0
        %1001 = vmatpush2.bf16.xpose.msra.mxu0 0
        %1002 = vmatprep.subr.bf16.mxu0 0
        %1003 = vmatpush2.bf16.xpose.msra.mxu0 0
        %1004 = vmatprep.subr.bf16.mxu0 0
        %1005 = vmatpush2.bf16.xpose.msra.mxu0 0
        %1006 = vmatprep.subr.bf16.mxu0 0
        %1007 = vmatpush2.bf16.xpose.msra.mxu0 0
        %1008 = vmatprep.subr.bf16.mxu0 0
        %1009 = vmatpush2.bf16.xpose.msra.mxu0 0
        %1010 = vmatprep.subr.bf16.mxu0 0
        %1011 = vmatpush2.bf16.xpose.msra.mxu0 0
        %1012 = vmatprep.mubr.bf16.mxu0 0
        %1013 = vmatmul.mubr.bf16.gmra.mxu0 %v975
        %v1014 = vpop.f32.mrf.mxu0
        %v1015 = vadd.f32 0.0, %v1014
        %v1016 = vpop.f32.mrf.mxu0
        %v1017 = vpop.f32.mrf.mxu0
        %v1018 = vpop.f32.mrf.mxu0
        %1019 = vdwg.mxu0
        %1021 = vrot.lane.b32.xlu0 %v749, 112
        %v1022 = vpop.permute.xlu0 %1021
        %1024 = vrot.lane.b32.xlu0 %v751, 112
        %v1025 = vpop.permute.xlu0 %1024
        %v1027 = vsel %vm754, %v1022, 0
        %v1030 = vsel %vm754, %v1025, 0
        %1032 = vmatprep.subr.bf16.mxu0 0
        %1033 = vmatpush1.bf16.xpose.msra.mxu0 0
        %1034 = vmatprep.subr.bf16.mxu0 0
        %1035 = vmatpush1.bf16.xpose.msra.mxu0 0
        %1036 = vmatprep.subr.bf16.mxu0 0
        %1037 = vmatpush1.bf16.xpose.msra.mxu0 0
        %1038 = vmatprep.subr.bf16.mxu0 0
        %1039 = vmatpush1.bf16.xpose.msra.mxu0 0
        %1040 = vmatprep.subr.bf16.mxu0 0
        %1041 = vmatpush1.bf16.xpose.msra.mxu0 0
        %1042 = vmatprep.subr.bf16.mxu0 0
        %1043 = vmatpush1.bf16.xpose.msra.mxu0 0
        %1044 = vmatprep.subr.bf16.mxu0 0
        %1045 = vmatpush1.bf16.xpose.msra.mxu0 0
        %1046 = vmatprep.subr.bf16.mxu0 0
        %1047 = vmatpush1.bf16.xpose.msra.mxu0 %v1030
        %1048 = vmatprep.subr.bf16.mxu0 0
        %1049 = vmatpush2.bf16.xpose.msra.mxu0 0
        %1050 = vmatprep.subr.bf16.mxu0 0
        %1051 = vmatpush2.bf16.xpose.msra.mxu0 0
        %1052 = vmatprep.subr.bf16.mxu0 0
        %1053 = vmatpush2.bf16.xpose.msra.mxu0 0
        %1054 = vmatprep.subr.bf16.mxu0 0
        %1055 = vmatpush2.bf16.xpose.msra.mxu0 0
        %1056 = vmatprep.subr.bf16.mxu0 0
        %1057 = vmatpush2.bf16.xpose.msra.mxu0 0
        %1058 = vmatprep.subr.bf16.mxu0 0
        %1059 = vmatpush2.bf16.xpose.msra.mxu0 0
        %1060 = vmatprep.subr.bf16.mxu0 0
        %1061 = vmatpush2.bf16.xpose.msra.mxu0 0
        %1062 = vmatprep.subr.bf16.mxu0 0
        %1063 = vmatpush2.bf16.xpose.msra.mxu0 0
        %1064 = vmatprep.mubr.bf16.mxu0 0
        %1065 = vmatmul.mubr.bf16.gmra.mxu0 %v1027
        %v1066 = vpop.f32.mrf.mxu0
        %v1067 = vadd.f32 0.0, %v1066
        %v1068 = vpop.f32.mrf.mxu0
        %v1069 = vpop.f32.mrf.mxu0
        %v1070 = vpop.f32.mrf.mxu0
        %1071 = vdwg.mxu0
        %v1072 = vsel %vm847, %v1015, -inf
        %1073 = vmax.xlane.f32.xlu0 %v1072
        %v1074 = vpop.xlane.xlu0 %1073
        %v1075 = vsel %vm847, %v1067, -inf
        %1076 = vmax.xlane.f32.xlu0 %v1075
        %v1077 = vpop.xlane.xlu0 %1076
        %v1078 = vsub.f32 %v1015, %v1074
        %v1079 = vsub.f32 %v1067, %v1077
        %v1080 = vmul.f32 %v1078, 1.442695
        %v1081 = vpow.pop %v1080
        %v1082 = vmul.f32 %v1079, 1.442695
        %v1083 = vpow.pop %v1082
        %v1084 = vsel %vm847, %v1081, 0.0
        %1085 = vadd.xlane.f32.xlu0 %v1084
        %v1086 = vpop.xlane.xlu0 %1085
        %v1087 = vsel %vm847, %v1083, 0.0
        %1088 = vadd.xlane.f32.xlu0 %v1087
        %v1089 = vpop.xlane.xlu0 %1088
        %v1090 = vrcp.pop %v1086
        %v1091 = vrcp.pop %v1089
        %v1092 = vmul.f32 %v1081, %v1090
        %v1093 = vmul.f32 %v1083, %v1091
        %v1094 = vpack.c.bf16 %v1092, %v1092
        %v1095 = vpack.c.bf16 %v1093, %v1093
        %1097 = vrot.lane.b32.xlu0 %v752, 112
        %v1098 = vpop.permute.xlu0 %1097
        %v1100 = vsel %vm847, %v1094, 0
        %v1103 = vsel %vm875, %v1098, 0
        %1105 = vmatprep.subr.bf16.mxu0 0
        %1106 = vmatpush1.bf16.msra.mxu0 0
        %1107 = vmatprep.subr.bf16.mxu0 0
        %1108 = vmatpush1.bf16.msra.mxu0 0
        %1109 = vmatprep.subr.bf16.mxu0 0
        %1110 = vmatpush1.bf16.msra.mxu0 0
        %1111 = vmatprep.subr.bf16.mxu0 0
        %1112 = vmatpush1.bf16.msra.mxu0 0
        %1113 = vmatprep.subr.bf16.mxu0 0
        %1114 = vmatpush1.bf16.msra.mxu0 0
        %1115 = vmatprep.subr.bf16.mxu0 0
        %1116 = vmatpush1.bf16.msra.mxu0 0
        %1117 = vmatprep.subr.bf16.mxu0 0
        %1118 = vmatpush1.bf16.msra.mxu0 0
        %1119 = vmatprep.subr.bf16.mxu0 0
        %1120 = vmatpush1.bf16.msra.mxu0 %v1103
        %1121 = vmatprep.subr.bf16.mxu0 0
        %1122 = vmatpush2.bf16.msra.mxu0 0
        %1123 = vmatprep.subr.bf16.mxu0 0
        %1124 = vmatpush2.bf16.msra.mxu0 0
        %1125 = vmatprep.subr.bf16.mxu0 0
        %1126 = vmatpush2.bf16.msra.mxu0 0
        %1127 = vmatprep.subr.bf16.mxu0 0
        %1128 = vmatpush2.bf16.msra.mxu0 0
        %1129 = vmatprep.subr.bf16.mxu0 0
        %1130 = vmatpush2.bf16.msra.mxu0 0
        %1131 = vmatprep.subr.bf16.mxu0 0
        %1132 = vmatpush2.bf16.msra.mxu0 0
        %1133 = vmatprep.subr.bf16.mxu0 0
        %1134 = vmatpush2.bf16.msra.mxu0 0
        %1135 = vmatprep.subr.bf16.mxu0 0
        %1136 = vmatpush2.bf16.msra.mxu0 0
        %1137 = vmatprep.mubr.bf16.mxu0 0
        %1138 = vmatmul.mubr.bf16.gmra.mxu0 %v1100
        %v1139 = vpop.f32.mrf.mxu0
        %v1140 = vadd.f32 0.0, %v1139
        %v1141 = vpop.f32.mrf.mxu0
        %v1142 = vpop.f32.mrf.mxu0
        %v1143 = vpop.f32.mrf.mxu0
        %1144 = vdwg.mxu0
        %1146 = vrot.lane.b32.xlu0 %v753, 112
        %v1147 = vpop.permute.xlu0 %1146
        %v1149 = vsel %vm847, %v1095, 0
        %v1152 = vsel %vm875, %v1147, 0
        %1154 = vmatprep.subr.bf16.mxu0 0
        %1155 = vmatpush1.bf16.msra.mxu0 0
        %1156 = vmatprep.subr.bf16.mxu0 0
        %1157 = vmatpush1.bf16.msra.mxu0 0
        %1158 = vmatprep.subr.bf16.mxu0 0
        %1159 = vmatpush1.bf16.msra.mxu0 0
        %1160 = vmatprep.subr.bf16.mxu0 0
        %1161 = vmatpush1.bf16.msra.mxu0 0
        %1162 = vmatprep.subr.bf16.mxu0 0
        %1163 = vmatpush1.bf16.msra.mxu0 0
        %1164 = vmatprep.subr.bf16.mxu0 0
        %1165 = vmatpush1.bf16.msra.mxu0 0
        %1166 = vmatprep.subr.bf16.mxu0 0
        %1167 = vmatpush1.bf16.msra.mxu0 0
        %1168 = vmatprep.subr.bf16.mxu0 0
        %1169 = vmatpush1.bf16.msra.mxu0 %v1152
        %1170 = vmatprep.subr.bf16.mxu0 0
        %1171 = vmatpush2.bf16.msra.mxu0 0
        %1172 = vmatprep.subr.bf16.mxu0 0
        %1173 = vmatpush2.bf16.msra.mxu0 0
        %1174 = vmatprep.subr.bf16.mxu0 0
        %1175 = vmatpush2.bf16.msra.mxu0 0
        %1176 = vmatprep.subr.bf16.mxu0 0
        %1177 = vmatpush2.bf16.msra.mxu0 0
        %1178 = vmatprep.subr.bf16.mxu0 0
        %1179 = vmatpush2.bf16.msra.mxu0 0
        %1180 = vmatprep.subr.bf16.mxu0 0
        %1181 = vmatpush2.bf16.msra.mxu0 0
        %1182 = vmatprep.subr.bf16.mxu0 0
        %1183 = vmatpush2.bf16.msra.mxu0 0
        %1184 = vmatprep.subr.bf16.mxu0 0
        %1185 = vmatpush2.bf16.msra.mxu0 0
        %1186 = vmatprep.mubr.bf16.mxu0 0
        %1187 = vmatmul.mubr.bf16.gmra.mxu0 %v1149
        %v1188 = vpop.f32.mrf.mxu0
        %v1189 = vadd.f32 0.0, %v1188
        %v1190 = vpop.f32.mrf.mxu0
        %v1191 = vpop.f32.mrf.mxu0
        %v1192 = vpop.f32.mrf.mxu0
        %1193 = vdwg.mxu0
        %v1194 = vpack.c.bf16 %v1189, %v1140
        %v1195 = vld [vmem:[%s9 + $0x8] sm:$0xf]
        %v1196 = vld [vmem:[%s9 + $0xc] sm:$0xf]
        %v1199 = vunpack.c.l.b16 %v1195
        %v1200 = vunpack.c.l.b16 %v1196
        %v1201 = vpack.c.b16 %v1200, %v1199
        %v1204 = vsel %vm754, %v1194, 0
        %1206 = vmatprep.subr.bf16.mxu0 0
        %1207 = vmatpush1.bf16.msra.mxu0 0
        %1208 = vmatprep.subr.bf16.mxu0 0
        %1209 = vmatpush1.bf16.msra.mxu0 0
        %1210 = vmatprep.subr.bf16.mxu0 0
        %1211 = vmatpush1.bf16.msra.mxu0 0
        %1212 = vmatprep.subr.bf16.mxu0 0
        %1213 = vmatpush1.bf16.msra.mxu0 0
        %1214 = vmatprep.subr.bf16.mxu0 0
        %1215 = vmatpush1.bf16.msra.mxu0 0
        %1216 = vmatprep.subr.bf16.mxu0 0
        %1217 = vmatpush1.bf16.msra.mxu0 0
        %1218 = vmatprep.subr.bf16.mxu0 0
        %1219 = vmatpush1.bf16.msra.mxu0 0
        %1220 = vmatprep.subr.bf16.mxu0 0
        %1221 = vmatpush1.bf16.msra.mxu0 %v1201
        %1222 = vmatprep.subr.bf16.mxu0 0
        %1223 = vmatpush2.bf16.msra.mxu0 0
        %1224 = vmatprep.subr.bf16.mxu0 0
        %1225 = vmatpush2.bf16.msra.mxu0 0
        %1226 = vmatprep.subr.bf16.mxu0 0
        %1227 = vmatpush2.bf16.msra.mxu0 0
        %1228 = vmatprep.subr.bf16.mxu0 0
        %1229 = vmatpush2.bf16.msra.mxu0 0
        %1230 = vmatprep.subr.bf16.mxu0 0
        %1231 = vmatpush2.bf16.msra.mxu0 0
        %1232 = vmatprep.subr.bf16.mxu0 0
        %1233 = vmatpush2.bf16.msra.mxu0 0
        %1234 = vmatprep.subr.bf16.mxu0 0
        %1235 = vmatpush2.bf16.msra.mxu0 0
        %1236 = vmatprep.subr.bf16.mxu0 0
        %1237 = vmatpush2.bf16.msra.mxu0 0
        %1238 = vmatprep.mubr.bf16.mxu0 0
        %1239 = vmatmul.mubr.bf16.gmra.mxu0 %v1204
        %v1240 = vpop.f32.mrf.mxu0
        %v1241 = vadd.f32 0.0, %v1240
        %v1242 = vpop.f32.mrf.mxu0
        %v1243 = vpop.f32.mrf.mxu0
        %v1244 = vadd.f32 0.0, %v1243
        %v1245 = vpop.f32.mrf.mxu0
        %1246 = vdwg.mxu0
        %v1249 = vunpack.c.l.b16 %v966
        %v1250 = vunpack.c.l.b16 %v967
        %v1251 = vpack.c.b16 %v1250, %v1249
        %v1254 = vsel %vm754, %v965, 0
        %1256 = vmatprep.subr.bf16.mxu0 0
        %1257 = vmatpush1.bf16.msra.mxu0 0
        %1258 = vmatprep.subr.bf16.mxu0 0
        %1259 = vmatpush1.bf16.msra.mxu0 0
        %1260 = vmatprep.subr.bf16.mxu0 0
        %1261 = vmatpush1.bf16.msra.mxu0 0
        %1262 = vmatprep.subr.bf16.mxu0 0
        %1263 = vmatpush1.bf16.msra.mxu0 0
        %1264 = vmatprep.subr.bf16.mxu0 0
        %1265 = vmatpush1.bf16.msra.mxu0 0
        %1266 = vmatprep.subr.bf16.mxu0 0
        %1267 = vmatpush1.bf16.msra.mxu0 0
        %1268 = vmatprep.subr.bf16.mxu0 0
        %1269 = vmatpush1.bf16.msra.mxu0 0
        %1270 = vmatprep.subr.bf16.mxu0 0
        %1271 = vmatpush1.bf16.msra.mxu0 %v1251
        %1272 = vmatprep.subr.bf16.mxu0 0
        %1273 = vmatpush2.bf16.msra.mxu0 0
        %1274 = vmatprep.subr.bf16.mxu0 0
        %1275 = vmatpush2.bf16.msra.mxu0 0
        %1276 = vmatprep.subr.bf16.mxu0 0
        %1277 = vmatpush2.bf16.msra.mxu0 0
        %1278 = vmatprep.subr.bf16.mxu0 0
        %1279 = vmatpush2.bf16.msra.mxu0 0
        %1280 = vmatprep.subr.bf16.mxu0 0
        %1281 = vmatpush2.bf16.msra.mxu0 0
        %1282 = vmatprep.subr.bf16.mxu0 0
        %1283 = vmatpush2.bf16.msra.mxu0 0
        %1284 = vmatprep.subr.bf16.mxu0 0
        %1285 = vmatpush2.bf16.msra.mxu0 0
        %1286 = vmatprep.subr.bf16.mxu0 0
        %1287 = vmatpush2.bf16.msra.mxu0 0
        %1288 = vmatprep.mubr.bf16.mxu0 0
        %1289 = vmatmul.mubr.bf16.gmra.mxu0 %v1254
        %v1290 = vpop.f32.mrf.mxu0
        %v1291 = vadd.f32 %v1241, %v1290
        %v1292 = vpop.f32.mrf.mxu0
        %v1293 = vpop.f32.mrf.mxu0
        %v1294 = vadd.f32 %v1244, %v1293
        %v1295 = vpop.f32.mrf.mxu0
        %1296 = vdwg.mxu0
        %1297 = vrot.lane.b32.xlu0 %v748, 96
        %v1298 = vpop.permute.xlu0 %1297
        %1299 = vrot.lane.b32.xlu0 %v750, 96
        %v1300 = vpop.permute.xlu0 %1299
        %v1302 = vsel %vm754, %v1298, 0
        %v1305 = vsel %vm754, %v1300, 0
        %1307 = vmatprep.subr.bf16.mxu0 0
        %1308 = vmatpush1.bf16.xpose.msra.mxu0 0
        %1309 = vmatprep.subr.bf16.mxu0 0
        %1310 = vmatpush1.bf16.xpose.msra.mxu0 0
        %1311 = vmatprep.subr.bf16.mxu0 0
        %1312 = vmatpush1.bf16.xpose.msra.mxu0 0
        %1313 = vmatprep.subr.bf16.mxu0 0
        %1314 = vmatpush1.bf16.xpose.msra.mxu0 0
        %1315 = vmatprep.subr.bf16.mxu0 0
        %1316 = vmatpush1.bf16.xpose.msra.mxu0 0
        %1317 = vmatprep.subr.bf16.mxu0 0
        %1318 = vmatpush1.bf16.xpose.msra.mxu0 0
        %1319 = vmatprep.subr.bf16.mxu0 0
        %1320 = vmatpush1.bf16.xpose.msra.mxu0 0
        %1321 = vmatprep.subr.bf16.mxu0 0
        %1322 = vmatpush1.bf16.xpose.msra.mxu0 %v1305
        %1323 = vmatprep.subr.bf16.mxu0 0
        %1324 = vmatpush2.bf16.xpose.msra.mxu0 0
        %1325 = vmatprep.subr.bf16.mxu0 0
        %1326 = vmatpush2.bf16.xpose.msra.mxu0 0
        %1327 = vmatprep.subr.bf16.mxu0 0
        %1328 = vmatpush2.bf16.xpose.msra.mxu0 0
        %1329 = vmatprep.subr.bf16.mxu0 0
        %1330 = vmatpush2.bf16.xpose.msra.mxu0 0
        %1331 = vmatprep.subr.bf16.mxu0 0
        %1332 = vmatpush2.bf16.xpose.msra.mxu0 0
        %1333 = vmatprep.subr.bf16.mxu0 0
        %1334 = vmatpush2.bf16.xpose.msra.mxu0 0
        %1335 = vmatprep.subr.bf16.mxu0 0
        %1336 = vmatpush2.bf16.xpose.msra.mxu0 0
        %1337 = vmatprep.subr.bf16.mxu0 0
        %1338 = vmatpush2.bf16.xpose.msra.mxu0 0
        %1339 = vmatprep.mubr.bf16.mxu0 0
        %1340 = vmatmul.mubr.bf16.gmra.mxu0 %v1302
        %v1341 = vpop.f32.mrf.mxu0
        %v1342 = vadd.f32 0.0, %v1341
        %v1343 = vpop.f32.mrf.mxu0
        %v1344 = vpop.f32.mrf.mxu0
        %v1345 = vpop.f32.mrf.mxu0
        %1346 = vdwg.mxu0
        %1347 = vrot.lane.b32.xlu0 %v749, 96
        %v1348 = vpop.permute.xlu0 %1347
        %1349 = vrot.lane.b32.xlu0 %v751, 96
        %v1350 = vpop.permute.xlu0 %1349
        %v1352 = vsel %vm754, %v1348, 0
        %v1355 = vsel %vm754, %v1350, 0
        %1357 = vmatprep.subr.bf16.mxu0 0
        %1358 = vmatpush1.bf16.xpose.msra.mxu0 0
        %1359 = vmatprep.subr.bf16.mxu0 0
        %1360 = vmatpush1.bf16.xpose.msra.mxu0 0
        %1361 = vmatprep.subr.bf16.mxu0 0
        %1362 = vmatpush1.bf16.xpose.msra.mxu0 0
        %1363 = vmatprep.subr.bf16.mxu0 0
        %1364 = vmatpush1.bf16.xpose.msra.mxu0 0
        %1365 = vmatprep.subr.bf16.mxu0 0
        %1366 = vmatpush1.bf16.xpose.msra.mxu0 0
        %1367 = vmatprep.subr.bf16.mxu0 0
        %1368 = vmatpush1.bf16.xpose.msra.mxu0 0
        %1369 = vmatprep.subr.bf16.mxu0 0
        %1370 = vmatpush1.bf16.xpose.msra.mxu0 0
        %1371 = vmatprep.subr.bf16.mxu0 0
        %1372 = vmatpush1.bf16.xpose.msra.mxu0 %v1355
        %1373 = vmatprep.subr.bf16.mxu0 0
        %1374 = vmatpush2.bf16.xpose.msra.mxu0 0
        %1375 = vmatprep.subr.bf16.mxu0 0
        %1376 = vmatpush2.bf16.xpose.msra.mxu0 0
        %1377 = vmatprep.subr.bf16.mxu0 0
        %1378 = vmatpush2.bf16.xpose.msra.mxu0 0
        %1379 = vmatprep.subr.bf16.mxu0 0
        %1380 = vmatpush2.bf16.xpose.msra.mxu0 0
        %1381 = vmatprep.subr.bf16.mxu0 0
        %1382 = vmatpush2.bf16.xpose.msra.mxu0 0
        %1383 = vmatprep.subr.bf16.mxu0 0
        %1384 = vmatpush2.bf16.xpose.msra.mxu0 0
        %1385 = vmatprep.subr.bf16.mxu0 0
        %1386 = vmatpush2.bf16.xpose.msra.mxu0 0
        %1387 = vmatprep.subr.bf16.mxu0 0
        %1388 = vmatpush2.bf16.xpose.msra.mxu0 0
        %1389 = vmatprep.mubr.bf16.mxu0 0
        %1390 = vmatmul.mubr.bf16.gmra.mxu0 %v1352
        %v1391 = vpop.f32.mrf.mxu0
        %v1392 = vadd.f32 0.0, %v1391
        %v1393 = vpop.f32.mrf.mxu0
        %v1394 = vpop.f32.mrf.mxu0
        %v1395 = vpop.f32.mrf.mxu0
        %1396 = vdwg.mxu0
        %v1397 = vsel %vm847, %v1342, -inf
        %1398 = vmax.xlane.f32.xlu0 %v1397
        %v1399 = vpop.xlane.xlu0 %1398
        %v1400 = vsel %vm847, %v1392, -inf
        %1401 = vmax.xlane.f32.xlu0 %v1400
        %v1402 = vpop.xlane.xlu0 %1401
        %v1403 = vsub.f32 %v1342, %v1399
        %v1404 = vsub.f32 %v1392, %v1402
        %v1405 = vmul.f32 %v1403, 1.442695
        %v1406 = vpow.pop %v1405
        %v1407 = vmul.f32 %v1404, 1.442695
        %v1408 = vpow.pop %v1407
        %v1409 = vsel %vm847, %v1406, 0.0
        %1410 = vadd.xlane.f32.xlu0 %v1409
        %v1411 = vpop.xlane.xlu0 %1410
        %v1412 = vsel %vm847, %v1408, 0.0
        %1413 = vadd.xlane.f32.xlu0 %v1412
        %v1414 = vpop.xlane.xlu0 %1413
        %v1415 = vrcp.pop %v1411
        %v1416 = vrcp.pop %v1414
        %v1417 = vmul.f32 %v1406, %v1415
        %v1418 = vmul.f32 %v1408, %v1416
        %v1419 = vpack.c.bf16 %v1417, %v1417
        %v1420 = vpack.c.bf16 %v1418, %v1418
        %1421 = vrot.lane.b32.xlu0 %v752, 96
        %v1422 = vpop.permute.xlu0 %1421
        %v1424 = vsel %vm847, %v1419, 0
        %v1427 = vsel %vm875, %v1422, 0
        %1429 = vmatprep.subr.bf16.mxu0 0
        %1430 = vmatpush1.bf16.msra.mxu0 0
        %1431 = vmatprep.subr.bf16.mxu0 0
        %1432 = vmatpush1.bf16.msra.mxu0 0
        %1433 = vmatprep.subr.bf16.mxu0 0
        %1434 = vmatpush1.bf16.msra.mxu0 0
        %1435 = vmatprep.subr.bf16.mxu0 0
        %1436 = vmatpush1.bf16.msra.mxu0 0
        %1437 = vmatprep.subr.bf16.mxu0 0
        %1438 = vmatpush1.bf16.msra.mxu0 0
        %1439 = vmatprep.subr.bf16.mxu0 0
        %1440 = vmatpush1.bf16.msra.mxu0 0
        %1441 = vmatprep.subr.bf16.mxu0 0
        %1442 = vmatpush1.bf16.msra.mxu0 0
        %1443 = vmatprep.subr.bf16.mxu0 0
        %1444 = vmatpush1.bf16.msra.mxu0 %v1427
        %1445 = vmatprep.subr.bf16.mxu0 0
        %1446 = vmatpush2.bf16.msra.mxu0 0
        %1447 = vmatprep.subr.bf16.mxu0 0
        %1448 = vmatpush2.bf16.msra.mxu0 0
        %1449 = vmatprep.subr.bf16.mxu0 0
        %1450 = vmatpush2.bf16.msra.mxu0 0
        %1451 = vmatprep.subr.bf16.mxu0 0
        %1452 = vmatpush2.bf16.msra.mxu0 0
        %1453 = vmatprep.subr.bf16.mxu0 0
        %1454 = vmatpush2.bf16.msra.mxu0 0
        %1455 = vmatprep.subr.bf16.mxu0 0
        %1456 = vmatpush2.bf16.msra.mxu0 0
        %1457 = vmatprep.subr.bf16.mxu0 0
        %1458 = vmatpush2.bf16.msra.mxu0 0
        %1459 = vmatprep.subr.bf16.mxu0 0
        %1460 = vmatpush2.bf16.msra.mxu0 0
        %1461 = vmatprep.mubr.bf16.mxu0 0
        %1462 = vmatmul.mubr.bf16.gmra.mxu0 %v1424
        %v1463 = vpop.f32.mrf.mxu0
        %v1464 = vadd.f32 0.0, %v1463
        %v1465 = vpop.f32.mrf.mxu0
        %v1466 = vpop.f32.mrf.mxu0
        %v1467 = vpop.f32.mrf.mxu0
        %1468 = vdwg.mxu0
        %1469 = vrot.lane.b32.xlu0 %v753, 96
        %v1470 = vpop.permute.xlu0 %1469
        %v1472 = vsel %vm847, %v1420, 0
        %v1475 = vsel %vm875, %v1470, 0
        %1477 = vmatprep.subr.bf16.mxu0 0
        %1478 = vmatpush1.bf16.msra.mxu0 0
        %1479 = vmatprep.subr.bf16.mxu0 0
        %1480 = vmatpush1.bf16.msra.mxu0 0
        %1481 = vmatprep.subr.bf16.mxu0 0
        %1482 = vmatpush1.bf16.msra.mxu0 0
        %1483 = vmatprep.subr.bf16.mxu0 0
        %1484 = vmatpush1.bf16.msra.mxu0 0
        %1485 = vmatprep.subr.bf16.mxu0 0
        %1486 = vmatpush1.bf16.msra.mxu0 0
        %1487 = vmatprep.subr.bf16.mxu0 0
        %1488 = vmatpush1.bf16.msra.mxu0 0
        %1489 = vmatprep.subr.bf16.mxu0 0
        %1490 = vmatpush1.bf16.msra.mxu0 0
        %1491 = vmatprep.subr.bf16.mxu0 0
        %1492 = vmatpush1.bf16.msra.mxu0 %v1475
        %1493 = vmatprep.subr.bf16.mxu0 0
        %1494 = vmatpush2.bf16.msra.mxu0 0
        %1495 = vmatprep.subr.bf16.mxu0 0
        %1496 = vmatpush2.bf16.msra.mxu0 0
        %1497 = vmatprep.subr.bf16.mxu0 0
        %1498 = vmatpush2.bf16.msra.mxu0 0
        %1499 = vmatprep.subr.bf16.mxu0 0
        %1500 = vmatpush2.bf16.msra.mxu0 0
        %1501 = vmatprep.subr.bf16.mxu0 0
        %1502 = vmatpush2.bf16.msra.mxu0 0
        %1503 = vmatprep.subr.bf16.mxu0 0
        %1504 = vmatpush2.bf16.msra.mxu0 0
        %1505 = vmatprep.subr.bf16.mxu0 0
        %1506 = vmatpush2.bf16.msra.mxu0 0
        %1507 = vmatprep.subr.bf16.mxu0 0
        %1508 = vmatpush2.bf16.msra.mxu0 0
        %1509 = vmatprep.mubr.bf16.mxu0 0
        %1510 = vmatmul.mubr.bf16.gmra.mxu0 %v1472
        %v1511 = vpop.f32.mrf.mxu0
        %v1512 = vadd.f32 0.0, %v1511
        %v1513 = vpop.f32.mrf.mxu0
        %v1514 = vpop.f32.mrf.mxu0
        %v1515 = vpop.f32.mrf.mxu0
        %1516 = vdwg.mxu0
        %v1517 = vpack.c.bf16 %v1512, %v1464
        %v1518 = vld [vmem:[%s9 + $0x10] sm:$0xf]
        %v1519 = vld [vmem:[%s9 + $0x14] sm:$0xf]
        %v1522 = vunpack.c.l.b16 %v1518
        %v1523 = vunpack.c.l.b16 %v1519
        %v1524 = vpack.c.b16 %v1523, %v1522
        %v1527 = vsel %vm754, %v1517, 0
        %1529 = vmatprep.subr.bf16.mxu0 0
        %1530 = vmatpush1.bf16.msra.mxu0 0
        %1531 = vmatprep.subr.bf16.mxu0 0
        %1532 = vmatpush1.bf16.msra.mxu0 0
        %1533 = vmatprep.subr.bf16.mxu0 0
        %1534 = vmatpush1.bf16.msra.mxu0 0
        %1535 = vmatprep.subr.bf16.mxu0 0
        %1536 = vmatpush1.bf16.msra.mxu0 0
        %1537 = vmatprep.subr.bf16.mxu0 0
        %1538 = vmatpush1.bf16.msra.mxu0 0
        %1539 = vmatprep.subr.bf16.mxu0 0
        %1540 = vmatpush1.bf16.msra.mxu0 0
        %1541 = vmatprep.subr.bf16.mxu0 0
        %1542 = vmatpush1.bf16.msra.mxu0 0
        %1543 = vmatprep.subr.bf16.mxu0 0
        %1544 = vmatpush1.bf16.msra.mxu0 %v1524
        %1545 = vmatprep.subr.bf16.mxu0 0
        %1546 = vmatpush2.bf16.msra.mxu0 0
        %1547 = vmatprep.subr.bf16.mxu0 0
        %1548 = vmatpush2.bf16.msra.mxu0 0
        %1549 = vmatprep.subr.bf16.mxu0 0
        %1550 = vmatpush2.bf16.msra.mxu0 0
        %1551 = vmatprep.subr.bf16.mxu0 0
        %1552 = vmatpush2.bf16.msra.mxu0 0
        %1553 = vmatprep.subr.bf16.mxu0 0
        %1554 = vmatpush2.bf16.msra.mxu0 0
        %1555 = vmatprep.subr.bf16.mxu0 0
        %1556 = vmatpush2.bf16.msra.mxu0 0
        %1557 = vmatprep.subr.bf16.mxu0 0
        %1558 = vmatpush2.bf16.msra.mxu0 0
        %1559 = vmatprep.subr.bf16.mxu0 0
        %1560 = vmatpush2.bf16.msra.mxu0 0
        %1561 = vmatprep.mubr.bf16.mxu0 0
        %1562 = vmatmul.mubr.bf16.gmra.mxu0 %v1527
        %v1563 = vpop.f32.mrf.mxu0
        %v1564 = vadd.f32 0.0, %v1563
        %v1565 = vpop.f32.mrf.mxu0
        %v1566 = vpop.f32.mrf.mxu0
        %v1567 = vadd.f32 0.0, %v1566
        %v1568 = vpop.f32.mrf.mxu0
        %1569 = vdwg.mxu0
        %v1570 = vadd.f32 %v1291, %v1564
        %v1571 = vadd.f32 %v1294, %v1567
        %1572 = vrot.lane.b32.xlu0 %v748, 80
        %v1573 = vpop.permute.xlu0 %1572
        %1574 = vrot.lane.b32.xlu0 %v750, 80
        %v1575 = vpop.permute.xlu0 %1574
        %v1577 = vsel %vm754, %v1573, 0
        %v1580 = vsel %vm754, %v1575, 0
        %1582 = vmatprep.subr.bf16.mxu0 0
        %1583 = vmatpush1.bf16.xpose.msra.mxu0 0
        %1584 = vmatprep.subr.bf16.mxu0 0
        %1585 = vmatpush1.bf16.xpose.msra.mxu0 0
        %1586 = vmatprep.subr.bf16.mxu0 0
        %1587 = vmatpush1.bf16.xpose.msra.mxu0 0
        %1588 = vmatprep.subr.bf16.mxu0 0
        %1589 = vmatpush1.bf16.xpose.msra.mxu0 0
        %1590 = vmatprep.subr.bf16.mxu0 0
        %1591 = vmatpush1.bf16.xpose.msra.mxu0 0
        %1592 = vmatprep.subr.bf16.mxu0 0
        %1593 = vmatpush1.bf16.xpose.msra.mxu0 0
        %1594 = vmatprep.subr.bf16.mxu0 0
        %1595 = vmatpush1.bf16.xpose.msra.mxu0 0
        %1596 = vmatprep.subr.bf16.mxu0 0
        %1597 = vmatpush1.bf16.xpose.msra.mxu0 %v1580
        %1598 = vmatprep.subr.bf16.mxu0 0
        %1599 = vmatpush2.bf16.xpose.msra.mxu0 0
        %1600 = vmatprep.subr.bf16.mxu0 0
        %1601 = vmatpush2.bf16.xpose.msra.mxu0 0
        %1602 = vmatprep.subr.bf16.mxu0 0
        %1603 = vmatpush2.bf16.xpose.msra.mxu0 0
        %1604 = vmatprep.subr.bf16.mxu0 0
        %1605 = vmatpush2.bf16.xpose.msra.mxu0 0
        %1606 = vmatprep.subr.bf16.mxu0 0
        %1607 = vmatpush2.bf16.xpose.msra.mxu0 0
        %1608 = vmatprep.subr.bf16.mxu0 0
        %1609 = vmatpush2.bf16.xpose.msra.mxu0 0
        %1610 = vmatprep.subr.bf16.mxu0 0
        %1611 = vmatpush2.bf16.xpose.msra.mxu0 0
        %1612 = vmatprep.subr.bf16.mxu0 0
        %1613 = vmatpush2.bf16.xpose.msra.mxu0 0
        %1614 = vmatprep.mubr.bf16.mxu0 0
        %1615 = vmatmul.mubr.bf16.gmra.mxu0 %v1577
        %v1616 = vpop.f32.mrf.mxu0
        %v1617 = vadd.f32 0.0, %v1616
        %v1618 = vpop.f32.mrf.mxu0
        %v1619 = vpop.f32.mrf.mxu0
        %v1620 = vpop.f32.mrf.mxu0
        %1621 = vdwg.mxu0
        %1622 = vrot.lane.b32.xlu0 %v749, 80
        %v1623 = vpop.permute.xlu0 %1622
        %1624 = vrot.lane.b32.xlu0 %v751, 80
        %v1625 = vpop.permute.xlu0 %1624
        %v1627 = vsel %vm754, %v1623, 0
        %v1630 = vsel %vm754, %v1625, 0
        %1632 = vmatprep.subr.bf16.mxu0 0
        %1633 = vmatpush1.bf16.xpose.msra.mxu0 0
        %1634 = vmatprep.subr.bf16.mxu0 0
        %1635 = vmatpush1.bf16.xpose.msra.mxu0 0
        %1636 = vmatprep.subr.bf16.mxu0 0
        %1637 = vmatpush1.bf16.xpose.msra.mxu0 0
        %1638 = vmatprep.subr.bf16.mxu0 0
        %1639 = vmatpush1.bf16.xpose.msra.mxu0 0
        %1640 = vmatprep.subr.bf16.mxu0 0
        %1641 = vmatpush1.bf16.xpose.msra.mxu0 0
        %1642 = vmatprep.subr.bf16.mxu0 0
        %1643 = vmatpush1.bf16.xpose.msra.mxu0 0
        %1644 = vmatprep.subr.bf16.mxu0 0
        %1645 = vmatpush1.bf16.xpose.msra.mxu0 0
        %1646 = vmatprep.subr.bf16.mxu0 0
        %1647 = vmatpush1.bf16.xpose.msra.mxu0 %v1630
        %1648 = vmatprep.subr.bf16.mxu0 0
        %1649 = vmatpush2.bf16.xpose.msra.mxu0 0
        %1650 = vmatprep.subr.bf16.mxu0 0
        %1651 = vmatpush2.bf16.xpose.msra.mxu0 0
        %1652 = vmatprep.subr.bf16.mxu0 0
        %1653 = vmatpush2.bf16.xpose.msra.mxu0 0
        %1654 = vmatprep.subr.bf16.mxu0 0
        %1655 = vmatpush2.bf16.xpose.msra.mxu0 0
        %1656 = vmatprep.subr.bf16.mxu0 0
        %1657 = vmatpush2.bf16.xpose.msra.mxu0 0
        %1658 = vmatprep.subr.bf16.mxu0 0
        %1659 = vmatpush2.bf16.xpose.msra.mxu0 0
        %1660 = vmatprep.subr.bf16.mxu0 0
        %1661 = vmatpush2.bf16.xpose.msra.mxu0 0
        %1662 = vmatprep.subr.bf16.mxu0 0
        %1663 = vmatpush2.bf16.xpose.msra.mxu0 0
        %1664 = vmatprep.mubr.bf16.mxu0 0
        %1665 = vmatmul.mubr.bf16.gmra.mxu0 %v1627
        %v1666 = vpop.f32.mrf.mxu0
        %v1667 = vadd.f32 0.0, %v1666
        %v1668 = vpop.f32.mrf.mxu0
        %v1669 = vpop.f32.mrf.mxu0
        %v1670 = vpop.f32.mrf.mxu0
        %1671 = vdwg.mxu0
        %v1672 = vsel %vm847, %v1617, -inf
        %1673 = vmax.xlane.f32.xlu0 %v1672
        %v1674 = vpop.xlane.xlu0 %1673
        %v1675 = vsel %vm847, %v1667, -inf
        %1676 = vmax.xlane.f32.xlu0 %v1675
        %v1677 = vpop.xlane.xlu0 %1676
        %v1678 = vsub.f32 %v1617, %v1674
        %v1679 = vsub.f32 %v1667, %v1677
        %v1680 = vmul.f32 %v1678, 1.442695
        %v1681 = vpow.pop %v1680
        %v1682 = vmul.f32 %v1679, 1.442695
        %v1683 = vpow.pop %v1682
        %v1684 = vsel %vm847, %v1681, 0.0
        %1685 = vadd.xlane.f32.xlu0 %v1684
        %v1686 = vpop.xlane.xlu0 %1685
        %v1687 = vsel %vm847, %v1683, 0.0
        %1688 = vadd.xlane.f32.xlu0 %v1687
        %v1689 = vpop.xlane.xlu0 %1688
        %v1690 = vrcp.pop %v1686
        %v1691 = vrcp.pop %v1689
        %v1692 = vmul.f32 %v1681, %v1690
        %v1693 = vmul.f32 %v1683, %v1691
        %v1694 = vpack.c.bf16 %v1692, %v1692
        %v1695 = vpack.c.bf16 %v1693, %v1693
        %1696 = vrot.lane.b32.xlu0 %v752, 80
        %v1697 = vpop.permute.xlu0 %1696
        %v1699 = vsel %vm847, %v1694, 0
        %v1702 = vsel %vm875, %v1697, 0
        %1704 = vmatprep.subr.bf16.mxu0 0
        %1705 = vmatpush1.bf16.msra.mxu0 0
        %1706 = vmatprep.subr.bf16.mxu0 0
        %1707 = vmatpush1.bf16.msra.mxu0 0
        %1708 = vmatprep.subr.bf16.mxu0 0
        %1709 = vmatpush1.bf16.msra.mxu0 0
        %1710 = vmatprep.subr.bf16.mxu0 0
        %1711 = vmatpush1.bf16.msra.mxu0 0
        %1712 = vmatprep.subr.bf16.mxu0 0
        %1713 = vmatpush1.bf16.msra.mxu0 0
        %1714 = vmatprep.subr.bf16.mxu0 0
        %1715 = vmatpush1.bf16.msra.mxu0 0
        %1716 = vmatprep.subr.bf16.mxu0 0
        %1717 = vmatpush1.bf16.msra.mxu0 0
        %1718 = vmatprep.subr.bf16.mxu0 0
        %1719 = vmatpush1.bf16.msra.mxu0 %v1702
        %1720 = vmatprep.subr.bf16.mxu0 0
        %1721 = vmatpush2.bf16.msra.mxu0 0
        %1722 = vmatprep.subr.bf16.mxu0 0
        %1723 = vmatpush2.bf16.msra.mxu0 0
        %1724 = vmatprep.subr.bf16.mxu0 0
        %1725 = vmatpush2.bf16.msra.mxu0 0
        %1726 = vmatprep.subr.bf16.mxu0 0
        %1727 = vmatpush2.bf16.msra.mxu0 0
        %1728 = vmatprep.subr.bf16.mxu0 0
        %1729 = vmatpush2.bf16.msra.mxu0 0
        %1730 = vmatprep.subr.bf16.mxu0 0
        %1731 = vmatpush2.bf16.msra.mxu0 0
        %1732 = vmatprep.subr.bf16.mxu0 0
        %1733 = vmatpush2.bf16.msra.mxu0 0
        %1734 = vmatprep.subr.bf16.mxu0 0
        %1735 = vmatpush2.bf16.msra.mxu0 0
        %1736 = vmatprep.mubr.bf16.mxu0 0
        %1737 = vmatmul.mubr.bf16.gmra.mxu0 %v1699
        %v1738 = vpop.f32.mrf.mxu0
        %v1739 = vadd.f32 0.0, %v1738
        %v1740 = vpop.f32.mrf.mxu0
        %v1741 = vpop.f32.mrf.mxu0
        %v1742 = vpop.f32.mrf.mxu0
        %1743 = vdwg.mxu0
        %1744 = vrot.lane.b32.xlu0 %v753, 80
        %v1745 = vpop.permute.xlu0 %1744
        %v1747 = vsel %vm847, %v1695, 0
        %v1750 = vsel %vm875, %v1745, 0
        %1752 = vmatprep.subr.bf16.mxu0 0
        %1753 = vmatpush1.bf16.msra.mxu0 0
        %1754 = vmatprep.subr.bf16.mxu0 0
        %1755 = vmatpush1.bf16.msra.mxu0 0
        %1756 = vmatprep.subr.bf16.mxu0 0
        %1757 = vmatpush1.bf16.msra.mxu0 0
        %1758 = vmatprep.subr.bf16.mxu0 0
        %1759 = vmatpush1.bf16.msra.mxu0 0
        %1760 = vmatprep.subr.bf16.mxu0 0
        %1761 = vmatpush1.bf16.msra.mxu0 0
        %1762 = vmatprep.subr.bf16.mxu0 0
        %1763 = vmatpush1.bf16.msra.mxu0 0
        %1764 = vmatprep.subr.bf16.mxu0 0
        %1765 = vmatpush1.bf16.msra.mxu0 0
        %1766 = vmatprep.subr.bf16.mxu0 0
        %1767 = vmatpush1.bf16.msra.mxu0 %v1750
        %1768 = vmatprep.subr.bf16.mxu0 0
        %1769 = vmatpush2.bf16.msra.mxu0 0
        %1770 = vmatprep.subr.bf16.mxu0 0
        %1771 = vmatpush2.bf16.msra.mxu0 0
        %1772 = vmatprep.subr.bf16.mxu0 0
        %1773 = vmatpush2.bf16.msra.mxu0 0
        %1774 = vmatprep.subr.bf16.mxu0 0
        %1775 = vmatpush2.bf16.msra.mxu0 0
        %1776 = vmatprep.subr.bf16.mxu0 0
        %1777 = vmatpush2.bf16.msra.mxu0 0
        %1778 = vmatprep.subr.bf16.mxu0 0
        %1779 = vmatpush2.bf16.msra.mxu0 0
        %1780 = vmatprep.subr.bf16.mxu0 0
        %1781 = vmatpush2.bf16.msra.mxu0 0
        %1782 = vmatprep.subr.bf16.mxu0 0
        %1783 = vmatpush2.bf16.msra.mxu0 0
        %1784 = vmatprep.mubr.bf16.mxu0 0
        %1785 = vmatmul.mubr.bf16.gmra.mxu0 %v1747
        %v1786 = vpop.f32.mrf.mxu0
        %v1787 = vadd.f32 0.0, %v1786
        %v1788 = vpop.f32.mrf.mxu0
        %v1789 = vpop.f32.mrf.mxu0
        %v1790 = vpop.f32.mrf.mxu0
        %1791 = vdwg.mxu0
        %v1792 = vpack.c.bf16 %v1787, %v1739
        %v1793 = vld [vmem:[%s9 + $0x18] sm:$0xf]
        %v1794 = vld [vmem:[%s9 + $0x1c] sm:$0xf]
        %v1797 = vunpack.c.l.b16 %v1793
        %v1798 = vunpack.c.l.b16 %v1794
        %v1799 = vpack.c.b16 %v1798, %v1797
        %v1802 = vsel %vm754, %v1792, 0
        %1804 = vmatprep.subr.bf16.mxu0 0
        %1805 = vmatpush1.bf16.msra.mxu0 0
        %1806 = vmatprep.subr.bf16.mxu0 0
        %1807 = vmatpush1.bf16.msra.mxu0 0
        %1808 = vmatprep.subr.bf16.mxu0 0
        %1809 = vmatpush1.bf16.msra.mxu0 0
        %1810 = vmatprep.subr.bf16.mxu0 0
        %1811 = vmatpush1.bf16.msra.mxu0 0
        %1812 = vmatprep.subr.bf16.mxu0 0
        %1813 = vmatpush1.bf16.msra.mxu0 0
        %1814 = vmatprep.subr.bf16.mxu0 0
        %1815 = vmatpush1.bf16.msra.mxu0 0
        %1816 = vmatprep.subr.bf16.mxu0 0
        %1817 = vmatpush1.bf16.msra.mxu0 0
        %1818 = vmatprep.subr.bf16.mxu0 0
        %1819 = vmatpush1.bf16.msra.mxu0 %v1799
        %1820 = vmatprep.subr.bf16.mxu0 0
        %1821 = vmatpush2.bf16.msra.mxu0 0
        %1822 = vmatprep.subr.bf16.mxu0 0
        %1823 = vmatpush2.bf16.msra.mxu0 0
        %1824 = vmatprep.subr.bf16.mxu0 0
        %1825 = vmatpush2.bf16.msra.mxu0 0
        %1826 = vmatprep.subr.bf16.mxu0 0
        %1827 = vmatpush2.bf16.msra.mxu0 0
        %1828 = vmatprep.subr.bf16.mxu0 0
        %1829 = vmatpush2.bf16.msra.mxu0 0
        %1830 = vmatprep.subr.bf16.mxu0 0
        %1831 = vmatpush2.bf16.msra.mxu0 0
        %1832 = vmatprep.subr.bf16.mxu0 0
        %1833 = vmatpush2.bf16.msra.mxu0 0
        %1834 = vmatprep.subr.bf16.mxu0 0
        %1835 = vmatpush2.bf16.msra.mxu0 0
        %1836 = vmatprep.mubr.bf16.mxu0 0
        %1837 = vmatmul.mubr.bf16.gmra.mxu0 %v1802
        %v1838 = vpop.f32.mrf.mxu0
        %v1839 = vadd.f32 0.0, %v1838
        %v1840 = vpop.f32.mrf.mxu0
        %v1841 = vpop.f32.mrf.mxu0
        %v1842 = vadd.f32 0.0, %v1841
        %v1843 = vpop.f32.mrf.mxu0
        %1844 = vdwg.mxu0
        %v1845 = vadd.f32 %v1570, %v1839
        %v1846 = vadd.f32 %v1571, %v1842
        %v1847 = vld [vmem:[%s10] sm:$0x1]
        %v1849 = vlaneseq
        %v1850 = vshrl.u32 %v1849, 7
        %v1851 = vsub.s32 0, %v1850
        %v1852 = vrot.slane %v1847, %v1851
        %v1854 = vadd.f32 %v1845, %v1852
        %v1855 = vadd.f32 %v1846, %v1852
        %1856 = vst.msk [vmem:[%s526] sm:$0xff] %vm569, %v1854
        %1857 = vst.msk [vmem:[%s526 + $0x8] sm:$0xff] %vm569, %v1855
        %s1858 = sand.u32 %s287, 1
        %s1859 = scalar_lea.sflag [#allocation4], %s1858
        %s1860 = sand.u32 %s287, 1
        %s1861 = smul.addr %s1860, 16
        %s1862 = scalar_lea.vmem [#allocation14], %s1861
        // Predicated region
        $region93: #{tpu_custom_call.1} parent=63 // pred_check
          %p1863 = pneg %p297
        $region94: #{tpu_custom_call.1} parent=63 // pred_check_branch
          %1865 = sbr.rel (%p1863) target = $region96
        $region95: #{tpu_custom_call.1} parent=63 // pred_region
          %s1866 = smul.u32 2, %s33
          %s1868 = ssub.s32 256, 256
          %1869 = vsyncadd %s1859, %s1868
          %s1870 = smul.addr %s1866, 128
          %s1871 = scalar_lea.hbm %s11, %s1870
          %s1872 = sshll.u32 %s1862, 4
          %s1873 = int_to_ptr.vmem [resolvable:$true] %s1872
          %1878 = dma.vmem_to_hbm [thread:$0]  %s1873, 256, %s1871, %s1859, 128, 128, 8
        $region96: #{tpu_custom_call.1} parent=63 // pred_fallthru
          _
      $region64: #{tpu_custom_call.1} parent=5 // pred_fallthru
        _
      %p1879 = scmp.le.s32.totalorder 2, %s28
      // Predicated region
      $region97: #{tpu_custom_call.1} parent=5 // pred_check
        %p1880 = pneg %p1879
      $region98: #{tpu_custom_call.1} parent=5 // pred_check_branch
        %1882 = sbr.rel (%p1880) target = $region100
      $region99: #{tpu_custom_call.1} parent=5 // pred_region
        %s1883 = ssub.s32 %s28, 2
        // Predicated region
        $region101: #{tpu_custom_call.1} parent=99 // pred_check
          %p1884 = pneg %p303
        $region102: #{tpu_custom_call.1} parent=99 // pred_check_branch
          %1886 = sbr.rel (%p1884) target = $region104
        $region103: #{tpu_custom_call.1} parent=99 // pred_region
          %s1887 = sand.u32 %s288, 1
          %s1888 = scalar_lea.sflag [#allocation4], %s1887
          %s1889 = sand.u32 %s288, 1
          %s1890 = smul.addr %s1889, 16
          %s1891 = scalar_lea.vmem [#allocation14], %s1890
          %1892 = dma.done %s1888, 256
        $region104: #{tpu_custom_call.1} parent=99 // pred_fallthru
          _
      $region100: #{tpu_custom_call.1} parent=5 // pred_fallthru
        _
    $region6: #{tpu_custom_call.1} parent=1 // loop_footer
      %s32 = sadd.s32 1, %s28
    $region7: #{tpu_custom_call.1} parent=1 // loop_footer_branch
      %27 = sbr.rel target = $region3
    $region8: #{tpu_custom_call.1} parent=1 // loop_exit
      _
    %1893 = vsyncpa [#allocation3], 1
    %s1894 = scalar_lea.sflag [#allocation3], 1
    %1895 = vsyncpa %s1894, 1
    %1896 = vsyncpa [#allocation6], 1
    %s1897 = scalar_lea.sflag [#allocation6], 1
    %1898 = vsyncpa %s1897, 1
    %1899 = vsyncpa [#allocation9], 1
    %1900 = vsyncpa [#allocation12], 1
    %1901 = vsyncpa [#allocation4], 1
    %s1902 = scalar_lea.sflag [#allocation4], 1
    %1903 = vsyncpa %s1902, 1

</llo_original>
